<compile_context>
chip_gen: v5e
topology: v5e:2x2
jax: 0.10.0
libtpu: 0.0.40
codegen_flags: <defaults>
</compile_context>

<pallas_src>
import functools
import math

import jax
import jax.numpy as jnp
from jax.experimental import pallas as pl
from jax.experimental.pallas import tpu as pltpu


# ----------------------------------------------------------------------------
# Fused whole-encoder kernel: grid = (batch_groups, n_layers).
# ----------------------------------------------------------------------------
def _layernorm(x, gamma, beta, eps):
    mean = jnp.mean(x, axis=-1, keepdims=True)
    var = jnp.mean(jnp.square(x - mean), axis=-1, keepdims=True)
    return ((x - mean) * jax.lax.rsqrt(var + eps)
            * gamma.astype(jnp.float32) + beta.astype(jnp.float32))


def _mm(a, b):
    """Feed the MXU in the weight's dtype (bf16 weights stay bf16); f32 accumulate."""
    return jnp.dot(a.astype(b.dtype), b, preferred_element_type=jnp.float32)


def _encoder_kernel(
    x_ref, kv_ref,
    wqkv_ref, bqkv_ref, wo_ref, bo_ref, ln1g_ref, ln1b_ref,
    w1_ref, b1_ref, w2_ref, b2_ref, ln2g_ref, ln2b_ref,
    o_ref, h_ref, ao_ref,
    *, n_heads, d_k, d_v, seq, block_batch, eps,
):
    # TODO(synk): dropout omitted (forward is eval-mode / p=0 -> identity).
    l = pl.program_id(1)
    rows = block_batch * seq

    # Layer 0: load this batch group's activations once; they stay resident in
    # the f32 VMEM scratch across all layers (no HBM traffic between layers).
    @pl.when(l == 0)
    def _():
        h_ref[...] = x_ref[0].astype(jnp.float32)

    h = h_ref[...]                                           # (rows, D) f32

    # Key-padding mask, evaluated ONCE per step (hoisted out of any head loop).
    key_ok = kv_ref[0][:, None] > 0.5                        # (BT, 1, 1, S) bool

    # ---- Fused QKV projection (1/sqrt(d_k) pre-folded into Wq / bq). -------
    qkv = _mm(h, wqkv_ref[0]) + bqkv_ref[0]                  # (rows, 3*H*d_k)

    def split_heads(lo, d):
        # (rows, H*d) slice -> (BT*H, S, d). Stack along an UNTILED (major)
        # axis: this is the head "transpose" built only from supported ops.
        parts = [
            qkv[:, lo + hh * d: lo + (hh + 1) * d].reshape(block_batch, seq, d)
            for hh in range(n_heads)
        ]
        return jnp.stack(parts, axis=1).reshape(block_batch * n_heads, seq, d)

    q = split_heads(0, d_k)
    k = split_heads(n_heads * d_k, d_k)
    v = split_heads(2 * n_heads * d_k, d_v)

    # ---- Attention: one batched dot over (batch * heads). ------------------
    # TODO(synk): for long sequences, tile the KV axis with online softmax
    # (flash-attention) instead of materializing the full (S, S) scores.
    s = jnp.einsum("zqd,zkd->zqk", q, k, preferred_element_type=jnp.float32)
    s = jnp.where(key_ok, s.reshape(block_batch, n_heads, seq, seq), -1e9)
    s = s.reshape(block_batch * n_heads, seq, seq)
    s = s - jnp.max(s, axis=-1, keepdims=True)
    p = jnp.exp(s)
    p = p * pl.reciprocal(jnp.sum(p, axis=-1, keepdims=True), approx=True)
    ao = jnp.einsum("zqk,zkd->zqd", p, v, preferred_element_type=jnp.float32)

    # Re-pack heads along the feature dim via lane-offset scratch stores so the
    # output projection is ONE matmul with contraction K = H*d_v.
    ao = ao.reshape(block_batch, n_heads, seq, d_v)
    for hh in range(n_heads):
        ao_ref[:, hh * d_v:(hh + 1) * d_v] = ao[:, hh].reshape(rows, d_v)

    # ---- Out-projection + residual + LayerNorm (fused epilogue). -----------
    y = _mm(ao_ref[...], wo_ref[0]) + bo_ref[0] + h
    y = _layernorm(y, ln1g_ref[0], ln1b_ref[0], eps)

    # ---- Position-wise FFN + residual + LayerNorm. --------------------------
    ff = jnp.maximum(_mm(y, w1_ref[0]) + b1_ref[0], 0.0)
    z = _mm(ff, w2_ref[0]) + b2_ref[0] + y
    z = _layernorm(z, ln2g_ref[0], ln2b_ref[0], eps)

    h_ref[...] = z

    @pl.when(l == pl.num_programs(1) - 1)
    def _():
        o_ref[0] = z.astype(o_ref.dtype)


def _choose_block_batch(batch, seq, target_rows=256):
    """Smallest divisor of `batch` whose row count (BT*S) reaches the MXU-M target."""
    for bt in range(1, batch + 1):
        if batch % bt == 0 and bt * seq >= target_rows:
            return bt
    return batch


def encoder_forward(x, key_valid, stacked, *, n_heads, d_k, d_v,
                    eps=1e-5, block_batch=None):
    """Full L-layer encoder forward in a single pallas_call.

    x:         (B, S, D) activations.
    key_valid: (B, S) key-padding mask, 1.0 = attend / 0.0 = masked.
    stacked:   per-layer weights stacked along a leading L axis (stack_and_fuse).
    """
    B, S, D = x.shape
    L = stacked["w_qkv"].shape[0]
    BT = _choose_block_batch(B, S) if block_batch is None else block_batch
    assert B % BT == 0, (B, BT)
    G = B // BT

    x_blocks = x.reshape(G, BT * S, D)
    kv_blocks = key_valid.astype(jnp.float32).reshape(G, BT, 1, S)

    w_order = ("w_qkv", "b_qkv", "wo", "bo", "ln1_g", "ln1_b",
               "w1", "b1", "w2", "b2", "ln2_g", "ln2_b")
    w_arrays = [stacked[name] for name in w_order]

    def layer_spec(arr):
        # One layer's weights per step along the (arbitrary) layer axis.
        return pl.BlockSpec((1,) + arr.shape[1:], lambda g, l: (l, 0, 0))

    kernel = functools.partial(
        _encoder_kernel, n_heads=n_heads, d_k=d_k, d_v=d_v,
        seq=S, block_batch=BT, eps=eps)

    # NOTE: at production sizes (large D / d_ffn) the full-weight BlockSpecs
    # should be checked against the per-generation VMEM budget (v7x: 64 MiB
    # physical) and the FFN tiled / vmem_limit_bytes raised if needed.
    out = pl.pallas_call(
        kernel,
        out_shape=jax.ShapeDtypeStruct((G, BT * S, D), x.dtype),
        grid=(G, L),                      # batch groups (parallel) x layers (arbitrary)
        in_specs=[
            pl.BlockSpec((1, BT * S, D), lambda g, l: (g, 0, 0)),      # x
            pl.BlockSpec((1, BT, 1, S), lambda g, l: (g, 0, 0, 0)),    # key_valid
        ] + [layer_spec(a) for a in w_arrays],
        out_specs=pl.BlockSpec((1, BT * S, D), lambda g, l: (g, 0, 0)),
        scratch_shapes=[
            pltpu.VMEM((BT * S, D), jnp.float32),               # resident activations
            pltpu.VMEM((BT * S, n_heads * d_v), jnp.float32),   # concatenated heads
        ],
        compiler_params=pltpu.CompilerParams(
            dimension_semantics=("parallel", "arbitrary")),
    )(x_blocks, kv_blocks, *w_arrays)
    return out.reshape(B, S, D)


# ----------------------------------------------------------------------------
# Parameter init (shapes follow the nn.Module), layer-stacking + QKV fusion.
# ----------------------------------------------------------------------------
def init_encoder_params(key, d_model, d_k, d_v, d_ffn, n_heads, n_layers):
    def linear(k, fan_in, fan_out):
        kw, kb = jax.random.split(k)
        w = jax.random.normal(kw, (fan_in, fan_out), jnp.float32) / math.sqrt(fan_in)
        b = 0.01 * jax.random.normal(kb, (fan_out,), jnp.float32)
        return w, b

    params = []
    for layer_idx in range(n_layers):
        ks = jax.random.split(jax.random.fold_in(key, layer_idx), 6)
        wq, bq = linear(ks[0], d_model, n_heads * d_k)
        wk, bk = linear(ks[1], d_model, n_heads * d_k)
        wv, bv = linear(ks[2], d_model, n_heads * d_v)
        wo, bo = linear(ks[3], n_heads * d_v, d_model)
        w1, b1 = linear(ks[4], d_model, d_ffn)
        w2, b2 = linear(ks[5], d_ffn, d_model)
        params.append({
            "wq": wq, "bq": bq, "wk": wk, "bk": bk, "wv": wv, "bv": bv,
            "wo": wo, "bo": bo,
            "ln1_g": jnp.ones((d_model,), jnp.float32),
            "ln1_b": jnp.zeros((d_model,), jnp.float32),
            "w1": w1, "b1": b1, "w2": w2, "b2": b2,
            "ln2_g": jnp.ones((d_model,), jnp.float32),
            "ln2_b": jnp.zeros((d_model,), jnp.float32),
        })
    return params


def stack_and_fuse(params, d_k, weight_dtype=jnp.float32):
    """Stack per-layer weights on a leading L axis; fuse Q/K/V and fold 1/sqrt(d_k).

    Only the big matmul weights are cast to `weight_dtype` (e.g. bf16 for the
    MXU); biases and LayerNorm params stay f32.
    """
    scale = 1.0 / math.sqrt(d_k)

    def stack(fn):
        return jnp.stack([fn(p) for p in params])

    return {
        "w_qkv": stack(lambda p: jnp.concatenate(
            [p["wq"] * scale, p["wk"], p["wv"]], axis=1)).astype(weight_dtype),
        "b_qkv": stack(lambda p: jnp.concatenate(
            [p["bq"] * scale, p["bk"], p["bv"]])[None, :]),
        "wo": stack(lambda p: p["wo"]).astype(weight_dtype),
        "bo": stack(lambda p: p["bo"][None, :]),
        "ln1_g": stack(lambda p: p["ln1_g"][None, :]),
        "ln1_b": stack(lambda p: p["ln1_b"][None, :]),
        "w1": stack(lambda p: p["w1"]).astype(weight_dtype),
        "b1": stack(lambda p: p["b1"][None, :]),
        "w2": stack(lambda p: p["w2"]).astype(weight_dtype),
        "b2": stack(lambda p: p["b2"][None, :]),
        "ln2_g": stack(lambda p: p["ln2_g"][None, :]),
        "ln2_b": stack(lambda p: p["ln2_b"][None, :]),
    }


# ----------------------------------------------------------------------------
# Pure-JAX reference (mirrors the PyTorch forward) for correctness checking.
# ----------------------------------------------------------------------------
def encoder_forward_ref(x, mask, params, n_heads, d_k, d_v, eps=1e-5):
    B, S, D = x.shape

    def ln(v, g, b):
        m = jnp.mean(v, -1, keepdims=True)
        var = jnp.mean(jnp.square(v - m), -1, keepdims=True)
        return (v - m) / jnp.sqrt(var + eps) * g + b

    for p in params:
        x2d = x.reshape(B * S, D)
        q = (x2d @ p["wq"] + p["bq"]).reshape(B, S, n_heads, d_k).transpose(0, 2, 1, 3)
        k = (x2d @ p["wk"] + p["bk"]).reshape(B, S, n_heads, d_k).transpose(0, 2, 1, 3)
        v = (x2d @ p["wv"] + p["bv"]).reshape(B, S, n_heads, d_v).transpose(0, 2, 1, 3)
        s = jnp.einsum("bhqd,bhkd->bhqk", q, k) / math.sqrt(d_k)
        s = jnp.where(mask[:, None] == 0, -1e9, s)
        a = jax.nn.softmax(s, axis=-1)
        o = jnp.einsum("bhqk,bhkd->bhqd", a, v).transpose(0, 2, 1, 3)
        o = o.reshape(B, S, n_heads * d_v)
        y = ln(o @ p["wo"] + p["bo"] + x, p["ln1_g"], p["ln1_b"])
        h = jnp.maximum(y @ p["w1"] + p["b1"], 0.0)
        x = ln(h @ p["w2"] + p["b2"] + y, p["ln2_g"], p["ln2_b"])
    return x


if __name__ == "__main__":
    d_model, d_k, d_v, d_ffn, n_heads, n_layers = 32, 8, 8, 64, 4, 2
    B, S = 2, 8

    key = jax.random.PRNGKey(0)
    k_x, k_p = jax.random.split(key)

    x = jax.random.normal(k_x, (B, S, d_model), jnp.float32)

    # Key-padding mask: batch 0 attends to all 8 positions, batch 1 to first 5.
    lengths = jnp.array([8, 5], dtype=jnp.int32)
    key_valid = (jnp.arange(S)[None, :] < lengths[:, None]).astype(jnp.float32)  # (B, S)
    mask = jnp.broadcast_to(key_valid[:, None, :], (B, S, S))   # reference uses (B, S, S)

    params = init_encoder_params(k_p, d_model, d_k, d_v, d_ffn, n_heads, n_layers)

    # --- f32 weights: tight check against the pure-JAX reference. ---
    stacked_f32 = stack_and_fuse(params, d_k, jnp.float32)
    out = encoder_forward(x, key_valid, stacked_f32,
                          n_heads=n_heads, d_k=d_k, d_v=d_v)
    out = jax.block_until_ready(out)

    ref = encoder_forward_ref(x, mask, params, n_heads, d_k, d_v)
    ref = jax.block_until_ready(ref)

    assert out.shape == (B, S, d_model)
    assert jnp.all(jnp.isfinite(out))
    max_err = float(jnp.max(jnp.abs(out - ref)))
    assert jnp.allclose(out, ref, atol=5e-3, rtol=5e-3), max_err

    # --- bf16 matmul weights (MXU-native on v6e/v7x): smoke test. ---
    stacked_bf16 = stack_and_fuse(params, d_k, jnp.bfloat16)
    out_bf16 = encoder_forward(x, key_valid, stacked_bf16,
                               n_heads=n_heads, d_k=d_k, d_v=d_v)
    out_bf16 = jax.block_until_ready(out_bf16)
    assert jnp.all(jnp.isfinite(out_bf16))
    assert float(jnp.max(jnp.abs(out_bf16 - ref))) < 0.25

    print("KERNEL_OK")
</pallas_src>

<mosaic_0001>
module attributes {stable_mosaic.version = 11 : i64} {
  func.func @_encoder_kernel(%arg0: i32, %arg1: i32, %arg2: memref<1x16x32xf32, #tpu.memory_space<vmem>>, %arg3: memref<1x2x1x8xf32, #tpu.memory_space<vmem>>, %arg4: memref<1x32x96xf32, #tpu.memory_space<vmem>>, %arg5: memref<1x1x96xf32, #tpu.memory_space<vmem>>, %arg6: memref<1x32x32xf32, #tpu.memory_space<vmem>>, %arg7: memref<1x1x32xf32, #tpu.memory_space<vmem>>, %arg8: memref<1x1x32xf32, #tpu.memory_space<vmem>>, %arg9: memref<1x1x32xf32, #tpu.memory_space<vmem>>, %arg10: memref<1x32x64xf32, #tpu.memory_space<vmem>>, %arg11: memref<1x1x64xf32, #tpu.memory_space<vmem>>, %arg12: memref<1x64x32xf32, #tpu.memory_space<vmem>>, %arg13: memref<1x1x32xf32, #tpu.memory_space<vmem>>, %arg14: memref<1x1x32xf32, #tpu.memory_space<vmem>>, %arg15: memref<1x1x32xf32, #tpu.memory_space<vmem>>, %arg16: memref<1x16x32xf32, #tpu.memory_space<vmem>>, %arg17: memref<16x32xf32, #tpu.memory_space<vmem>>, %arg18: memref<16x32xf32, #tpu.memory_space<vmem>>) attributes {dimension_semantics = [#tpu.dimension_semantics<parallel>, #tpu.dimension_semantics<arbitrary>], iteration_bounds = array<i64: 1, 2>, scalar_prefetch = 0 : i64, scratch_operands = 2 : i64, tpu.core_type = #tpu.core_type<tc>, window_params = [{transform_indices = @transform_0, window_bounds = array<i64: 1, 16, 32>}, {transform_indices = @transform_1, window_bounds = array<i64: 1, 2, 1, 8>}, {transform_indices = @transform_2, window_bounds = array<i64: 1, 32, 96>}, {transform_indices = @transform_3, window_bounds = array<i64: 1, 1, 96>}, {transform_indices = @transform_4, window_bounds = array<i64: 1, 32, 32>}, {transform_indices = @transform_5, window_bounds = array<i64: 1, 1, 32>}, {transform_indices = @transform_6, window_bounds = array<i64: 1, 1, 32>}, {transform_indices = @transform_7, window_bounds = array<i64: 1, 1, 32>}, {transform_indices = @transform_8, window_bounds = array<i64: 1, 32, 64>}, {transform_indices = @transform_9, window_bounds = array<i64: 1, 1, 64>}, {transform_indices = @transform_10, window_bounds = array<i64: 1, 64, 32>}, {transform_indices = @transform_11, window_bounds = array<i64: 1, 1, 32>}, {transform_indices = @transform_12, window_bounds = array<i64: 1, 1, 32>}, {transform_indices = @transform_13, window_bounds = array<i64: 1, 1, 32>}, {transform_indices = @transform_14, window_bounds = array<i64: 1, 16, 32>}]} {
    %c0_i32 = arith.constant 0 : i32
    %0 = arith.cmpi eq, %arg1, %c0_i32 : i32
    %1 = arith.extui %0 : i1 to i32
    %c0_i32_0 = arith.constant 0 : i32
    %2 = arith.cmpi ne, %1, %c0_i32_0 : i32
    scf.if %2 {
      %c0_72 = arith.constant 0 : index
      %c0_73 = arith.constant 0 : index
      %c0_74 = arith.constant 0 : index
      %175 = vector.load %arg2[%c0_72, %c0_73, %c0_74] : memref<1x16x32xf32, #tpu.memory_space<vmem>>, vector<1x16x32xf32>
      %176 = vector.shape_cast %175 : vector<1x16x32xf32> to vector<16x32xf32>
      %c0_75 = arith.constant 0 : index
      %c0_76 = arith.constant 0 : index
      %177 = vector.load %arg17[%c0_75, %c0_76] : memref<16x32xf32, #tpu.memory_space<vmem>>, vector<16x32xf32>
      tpu.vector_store %arg17[%c0_75, %c0_76], %176 {strides = array<i32>} : memref<16x32xf32, #tpu.memory_space<vmem>>, vector<16x32xf32>,
    } else {
    }
    %c0 = arith.constant 0 : index
    %c0_1 = arith.constant 0 : index
    %3 = vector.load %arg17[%c0, %c0_1] : memref<16x32xf32, #tpu.memory_space<vmem>>, vector<16x32xf32>
    %c0_2 = arith.constant 0 : index
    %c0_3 = arith.constant 0 : index
    %c0_4 = arith.constant 0 : index
    %c0_5 = arith.constant 0 : index
    %4 = vector.load %arg3[%c0_2, %c0_3, %c0_4, %c0_5] : memref<1x2x1x8xf32, #tpu.memory_space<vmem>>, vector<1x2x1x8xf32>
    %5 = vector.shape_cast %4 : vector<1x2x1x8xf32> to vector<2x1x8xf32>
    %6 = vector.shape_cast %5 : vector<2x1x8xf32> to vector<2x1x1x8xf32>
    %cst = arith.constant 5.000000e-01 : f32
    %7 = vector.broadcast %cst : f32 to vector<2x1x1x8xf32>
    %8 = arith.cmpf ogt, %6, %7 : vector<2x1x1x8xf32>
    %c0_6 = arith.constant 0 : index
    %c0_7 = arith.constant 0 : index
    %c0_8 = arith.constant 0 : index
    %9 = vector.load %arg4[%c0_6, %c0_7, %c0_8] : memref<1x32x96xf32, #tpu.memory_space<vmem>>, vector<1x32x96xf32>
    %10 = vector.shape_cast %9 : vector<1x32x96xf32> to vector<32x96xf32>
    %cst_9 = arith.constant dense<0.000000e+00> : vector<16x96xf32>
    %11 = tpu.matmul %3, %10, %cst_9 {dimension_numbers = #tpu.dot_dimension_numbers<[1], [0], [0], [1], [0, 0, 1, 1], [], []>} : vector<16x32xf32>, vector<32x96xf32>, vector<16x96xf32> -> vector<16x96xf32>
    %c0_10 = arith.constant 0 : index
    %c0_11 = arith.constant 0 : index
    %c0_12 = arith.constant 0 : index
    %12 = vector.load %arg5[%c0_10, %c0_11, %c0_12] : memref<1x1x96xf32, #tpu.memory_space<vmem>>, vector<1x1x96xf32>
    %13 = vector.shape_cast %12 : vector<1x1x96xf32> to vector<1x96xf32>
    %14 = vector.broadcast %13 : vector<1x96xf32> to vector<16x96xf32>
    %15 = arith.addf %11, %14 : vector<16x96xf32>
    %16 = vector.extract_strided_slice %15 {offsets = [0, 0], sizes = [16, 8], strides = [1, 1]} : vector<16x96xf32> to vector<16x8xf32>
    %17 = vector.shape_cast %16 : vector<16x8xf32> to vector<2x8x8xf32>
    %18 = vector.extract_strided_slice %15 {offsets = [0, 8], sizes = [16, 8], strides = [1, 1]} : vector<16x96xf32> to vector<16x8xf32>
    %19 = vector.shape_cast %18 : vector<16x8xf32> to vector<2x8x8xf32>
    %20 = vector.extract_strided_slice %15 {offsets = [0, 16], sizes = [16, 8], strides = [1, 1]} : vector<16x96xf32> to vector<16x8xf32>
    %21 = vector.shape_cast %20 : vector<16x8xf32> to vector<2x8x8xf32>
    %22 = vector.extract_strided_slice %15 {offsets = [0, 24], sizes = [16, 8], strides = [1, 1]} : vector<16x96xf32> to vector<16x8xf32>
    %23 = vector.shape_cast %22 : vector<16x8xf32> to vector<2x8x8xf32>
    %24 = vector.shape_cast %17 : vector<2x8x8xf32> to vector<2x1x8x8xf32>
    %25 = vector.shape_cast %19 : vector<2x8x8xf32> to vector<2x1x8x8xf32>
    %26 = vector.shape_cast %21 : vector<2x8x8xf32> to vector<2x1x8x8xf32>
    %27 = vector.shape_cast %23 : vector<2x8x8xf32> to vector<2x1x8x8xf32>
    %28 = tpu.concatenate %24, %25, %26, %27 in 1 : vector<2x1x8x8xf32>, vector<2x1x8x8xf32>, vector<2x1x8x8xf32>, vector<2x1x8x8xf32> -> vector<2x4x8x8xf32>
    %29 = vector.shape_cast %28 : vector<2x4x8x8xf32> to vector<8x8x8xf32>
    %30 = vector.extract_strided_slice %15 {offsets = [0, 32], sizes = [16, 8], strides = [1, 1]} : vector<16x96xf32> to vector<16x8xf32>
    %31 = vector.shape_cast %30 : vector<16x8xf32> to vector<2x8x8xf32>
    %32 = vector.extract_strided_slice %15 {offsets = [0, 40], sizes = [16, 8], strides = [1, 1]} : vector<16x96xf32> to vector<16x8xf32>
    %33 = vector.shape_cast %32 : vector<16x8xf32> to vector<2x8x8xf32>
    %34 = vector.extract_strided_slice %15 {offsets = [0, 48], sizes = [16, 8], strides = [1, 1]} : vector<16x96xf32> to vector<16x8xf32>
    %35 = vector.shape_cast %34 : vector<16x8xf32> to vector<2x8x8xf32>
    %36 = vector.extract_strided_slice %15 {offsets = [0, 56], sizes = [16, 8], strides = [1, 1]} : vector<16x96xf32> to vector<16x8xf32>
    %37 = vector.shape_cast %36 : vector<16x8xf32> to vector<2x8x8xf32>
    %38 = vector.shape_cast %31 : vector<2x8x8xf32> to vector<2x1x8x8xf32>
    %39 = vector.shape_cast %33 : vector<2x8x8xf32> to vector<2x1x8x8xf32>
    %40 = vector.shape_cast %35 : vector<2x8x8xf32> to vector<2x1x8x8xf32>
    %41 = vector.shape_cast %37 : vector<2x8x8xf32> to vector<2x1x8x8xf32>
    %42 = tpu.concatenate %38, %39, %40, %41 in 1 : vector<2x1x8x8xf32>, vector<2x1x8x8xf32>, vector<2x1x8x8xf32>, vector<2x1x8x8xf32> -> vector<2x4x8x8xf32>
    %43 = vector.shape_cast %42 : vector<2x4x8x8xf32> to vector<8x8x8xf32>
    %44 = vector.extract_strided_slice %15 {offsets = [0, 64], sizes = [16, 8], strides = [1, 1]} : vector<16x96xf32> to vector<16x8xf32>
    %45 = vector.shape_cast %44 : vector<16x8xf32> to vector<2x8x8xf32>
    %46 = vector.extract_strided_slice %15 {offsets = [0, 72], sizes = [16, 8], strides = [1, 1]} : vector<16x96xf32> to vector<16x8xf32>
    %47 = vector.shape_cast %46 : vector<16x8xf32> to vector<2x8x8xf32>
    %48 = vector.extract_strided_slice %15 {offsets = [0, 80], sizes = [16, 8], strides = [1, 1]} : vector<16x96xf32> to vector<16x8xf32>
    %49 = vector.shape_cast %48 : vector<16x8xf32> to vector<2x8x8xf32>
    %50 = vector.extract_strided_slice %15 {offsets = [0, 88], sizes = [16, 8], strides = [1, 1]} : vector<16x96xf32> to vector<16x8xf32>
    %51 = vector.shape_cast %50 : vector<16x8xf32> to vector<2x8x8xf32>
    %52 = vector.shape_cast %45 : vector<2x8x8xf32> to vector<2x1x8x8xf32>
    %53 = vector.shape_cast %47 : vector<2x8x8xf32> to vector<2x1x8x8xf32>
    %54 = vector.shape_cast %49 : vector<2x8x8xf32> to vector<2x1x8x8xf32>
    %55 = vector.shape_cast %51 : vector<2x8x8xf32> to vector<2x1x8x8xf32>
    %56 = tpu.concatenate %52, %53, %54, %55 in 1 : vector<2x1x8x8xf32>, vector<2x1x8x8xf32>, vector<2x1x8x8xf32>, vector<2x1x8x8xf32> -> vector<2x4x8x8xf32>
    %57 = vector.shape_cast %56 : vector<2x4x8x8xf32> to vector<8x8x8xf32>
    "tpu.trace_start"() <{level = 10 : i32, message = "zqd,zkd->zqk"}> : () -> ()
    %cst_13 = arith.constant dense<0.000000e+00> : vector<8x8x8xf32>
    %58 = tpu.matmul %29, %43, %cst_13 {dimension_numbers = #tpu.dot_dimension_numbers<[2], [2], [1], [1], [0, 0, 0, 1, 1, 1], [0], [0]>} : vector<8x8x8xf32>, vector<8x8x8xf32>, vector<8x8x8xf32> -> vector<8x8x8xf32>
    "tpu.trace_stop"() : () -> ()
    %59 = vector.shape_cast %58 : vector<8x8x8xf32> to vector<2x4x8x8xf32>
    %cst_14 = arith.constant -1.000000e+09 : f32
    %60 = vector.shape_cast %8 : vector<2x1x1x8xi1> to vector<2x1x1x8xi1>
    %61 = vector.broadcast %60 : vector<2x1x1x8xi1> to vector<2x4x8x8xi1>
    %62 = vector.broadcast %cst_14 : f32 to vector<2x4x8x8xf32>
    %63 = arith.select %61, %59, %62 : vector<2x4x8x8xi1>, vector<2x4x8x8xf32>
    %64 = vector.shape_cast %63 : vector<2x4x8x8xf32> to vector<8x8x8xf32>
    %cst_15 = arith.constant dense<0xFF800000> : vector<8x8xf32>
    %65 = vector.multi_reduction <maximumf>, %64, %cst_15 [2] : vector<8x8x8xf32> to vector<8x8xf32>
    %66 = vector.shape_cast %65 : vector<8x8xf32> to vector<8x8x1xf32>
    %67 = vector.broadcast %66 : vector<8x8x1xf32> to vector<8x8x8xf32>
    %68 = arith.subf %64, %67 : vector<8x8x8xf32>
    %69 = math.exp %68 : vector<8x8x8xf32>
    %cst_16 = arith.constant dense<0.000000e+00> : vector<8x8xf32>
    %70 = vector.multi_reduction <add>, %69, %cst_16 [2] : vector<8x8x8xf32> to vector<8x8xf32>
    %71 = vector.shape_cast %70 : vector<8x8xf32> to vector<8x8x1xf32>
    %72 = tpu.reciprocal %71 {approx = true} : vector<8x8x1xf32> -> vector<8x8x1xf32>
    %73 = vector.broadcast %72 : vector<8x8x1xf32> to vector<8x8x8xf32>
    %74 = arith.mulf %69, %73 : vector<8x8x8xf32>
    "tpu.trace_start"() <{level = 10 : i32, message = "zqk,zkd->zqd"}> : () -> ()
    %cst_17 = arith.constant dense<0.000000e+00> : vector<8x8x8xf32>
    %75 = tpu.matmul %74, %57, %cst_17 {dimension_numbers = #tpu.dot_dimension_numbers<[2], [1], [1], [2], [0, 0, 0, 1, 1, 2], [0], [0]>} : vector<8x8x8xf32>, vector<8x8x8xf32>, vector<8x8x8xf32> -> vector<8x8x8xf32>
    "tpu.trace_stop"() : () -> ()
    %76 = vector.shape_cast %75 : vector<8x8x8xf32> to vector<2x4x8x8xf32>
    %77 = vector.extract_strided_slice %76 {offsets = [0, 0, 0, 0], sizes = [2, 1, 8, 8], strides = [1, 1, 1, 1]} : vector<2x4x8x8xf32> to vector<2x1x8x8xf32>
    %78 = vector.shape_cast %77 : vector<2x1x8x8xf32> to vector<2x8x8xf32>
    %79 = vector.shape_cast %78 : vector<2x8x8xf32> to vector<16x8xf32>
    %c0_18 = arith.constant 0 : index
    %c0_19 = arith.constant 0 : index
    %80 = vector.load %arg18[%c0_18, %c0_19] : memref<16x32xf32, #tpu.memory_space<vmem>>, vector<16x8xf32>
    tpu.vector_store %arg18[%c0_18, %c0_19], %79 {strides = array<i32>} : memref<16x32xf32, #tpu.memory_space<vmem>>, vector<16x8xf32>,
    %81 = vector.extract_strided_slice %76 {offsets = [0, 1, 0, 0], sizes = [2, 1, 8, 8], strides = [1, 1, 1, 1]} : vector<2x4x8x8xf32> to vector<2x1x8x8xf32>
    %82 = vector.shape_cast %81 : vector<2x1x8x8xf32> to vector<2x8x8xf32>
    %83 = vector.shape_cast %82 : vector<2x8x8xf32> to vector<16x8xf32>
    %c0_20 = arith.constant 0 : index
    %c8 = arith.constant 8 : index
    %84 = vector.load %arg18[%c0_20, %c8] : memref<16x32xf32, #tpu.memory_space<vmem>>, vector<16x8xf32>
    tpu.vector_store %arg18[%c0_20, %c8], %83 {strides = array<i32>} : memref<16x32xf32, #tpu.memory_space<vmem>>, vector<16x8xf32>,
    %85 = vector.extract_strided_slice %76 {offsets = [0, 2, 0, 0], sizes = [2, 1, 8, 8], strides = [1, 1, 1, 1]} : vector<2x4x8x8xf32> to vector<2x1x8x8xf32>
    %86 = vector.shape_cast %85 : vector<2x1x8x8xf32> to vector<2x8x8xf32>
    %87 = vector.shape_cast %86 : vector<2x8x8xf32> to vector<16x8xf32>
    %c0_21 = arith.constant 0 : index
    %c16 = arith.constant 16 : index
    %88 = vector.load %arg18[%c0_21, %c16] : memref<16x32xf32, #tpu.memory_space<vmem>>, vector<16x8xf32>
    tpu.vector_store %arg18[%c0_21, %c16], %87 {strides = array<i32>} : memref<16x32xf32, #tpu.memory_space<vmem>>, vector<16x8xf32>,
    %89 = vector.extract_strided_slice %76 {offsets = [0, 3, 0, 0], sizes = [2, 1, 8, 8], strides = [1, 1, 1, 1]} : vector<2x4x8x8xf32> to vector<2x1x8x8xf32>
    %90 = vector.shape_cast %89 : vector<2x1x8x8xf32> to vector<2x8x8xf32>
    %91 = vector.shape_cast %90 : vector<2x8x8xf32> to vector<16x8xf32>
    %c0_22 = arith.constant 0 : index
    %c24 = arith.constant 24 : index
    %92 = vector.load %arg18[%c0_22, %c24] : memref<16x32xf32, #tpu.memory_space<vmem>>, vector<16x8xf32>
    tpu.vector_store %arg18[%c0_22, %c24], %91 {strides = array<i32>} : memref<16x32xf32, #tpu.memory_space<vmem>>, vector<16x8xf32>,
    %c0_23 = arith.constant 0 : index
    %c0_24 = arith.constant 0 : index
    %93 = vector.load %arg18[%c0_23, %c0_24] : memref<16x32xf32, #tpu.memory_space<vmem>>, vector<16x32xf32>
    %c0_25 = arith.constant 0 : index
    %c0_26 = arith.constant 0 : index
    %c0_27 = arith.constant 0 : index
    %94 = vector.load %arg6[%c0_25, %c0_26, %c0_27] : memref<1x32x32xf32, #tpu.memory_space<vmem>>, vector<1x32x32xf32>
    %95 = vector.shape_cast %94 : vector<1x32x32xf32> to vector<32x32xf32>
    %cst_28 = arith.constant dense<0.000000e+00> : vector<16x32xf32>
    %96 = tpu.matmul %93, %95, %cst_28 {dimension_numbers = #tpu.dot_dimension_numbers<[1], [0], [0], [1], [0, 0, 1, 1], [], []>} : vector<16x32xf32>, vector<32x32xf32>, vector<16x32xf32> -> vector<16x32xf32>
    %c0_29 = arith.constant 0 : index
    %c0_30 = arith.constant 0 : index
    %c0_31 = arith.constant 0 : index
    %97 = vector.load %arg7[%c0_29, %c0_30, %c0_31] : memref<1x1x32xf32, #tpu.memory_space<vmem>>, vector<1x1x32xf32>
    %98 = vector.shape_cast %97 : vector<1x1x32xf32> to vector<1x32xf32>
    %99 = vector.broadcast %98 : vector<1x32xf32> to vector<16x32xf32>
    %100 = arith.addf %96, %99 : vector<16x32xf32>
    %101 = arith.addf %100, %3 : vector<16x32xf32>
    %c0_32 = arith.constant 0 : index
    %c0_33 = arith.constant 0 : index
    %c0_34 = arith.constant 0 : index
    %102 = vector.load %arg8[%c0_32, %c0_33, %c0_34] : memref<1x1x32xf32, #tpu.memory_space<vmem>>, vector<1x1x32xf32>
    %103 = vector.shape_cast %102 : vector<1x1x32xf32> to vector<1x32xf32>
    %c0_35 = arith.constant 0 : index
    %c0_36 = arith.constant 0 : index
    %c0_37 = arith.constant 0 : index
    %104 = vector.load %arg9[%c0_35, %c0_36, %c0_37] : memref<1x1x32xf32, #tpu.memory_space<vmem>>, vector<1x1x32xf32>
    %105 = vector.shape_cast %104 : vector<1x1x32xf32> to vector<1x32xf32>
    %cst_38 = arith.constant dense<0.000000e+00> : vector<16xf32>
    %106 = vector.multi_reduction <add>, %101, %cst_38 [1] : vector<16x32xf32> to vector<16xf32>
    %107 = vector.shape_cast %106 : vector<16xf32> to vector<16x1xf32>
    %cst_39 = arith.constant 3.200000e+01 : f32
    %108 = vector.broadcast %cst_39 : f32 to vector<16x1xf32>
    %109 = arith.divf %107, %108 : vector<16x1xf32>
    %110 = vector.broadcast %109 : vector<16x1xf32> to vector<16x32xf32>
    %111 = arith.subf %101, %110 : vector<16x32xf32>
    %112 = arith.mulf %111, %111 : vector<16x32xf32>
    %cst_40 = arith.constant dense<0.000000e+00> : vector<16xf32>
    %113 = vector.multi_reduction <add>, %112, %cst_40 [1] : vector<16x32xf32> to vector<16xf32>
    %114 = vector.shape_cast %113 : vector<16xf32> to vector<16x1xf32>
    %cst_41 = arith.constant 3.200000e+01 : f32
    %115 = vector.broadcast %cst_41 : f32 to vector<16x1xf32>
    %116 = arith.divf %114, %115 : vector<16x1xf32>
    %117 = vector.broadcast %109 : vector<16x1xf32> to vector<16x32xf32>
    %118 = arith.subf %101, %117 : vector<16x32xf32>
    %cst_42 = arith.constant 9.99999974E-6 : f32
    %119 = vector.broadcast %cst_42 : f32 to vector<16x1xf32>
    %120 = arith.addf %116, %119 : vector<16x1xf32>
    %121 = math.rsqrt %120 : vector<16x1xf32>
    %122 = vector.broadcast %121 : vector<16x1xf32> to vector<16x32xf32>
    %123 = arith.mulf %118, %122 : vector<16x32xf32>
    %124 = vector.broadcast %103 : vector<1x32xf32> to vector<16x32xf32>
    %125 = arith.mulf %123, %124 : vector<16x32xf32>
    %126 = vector.broadcast %105 : vector<1x32xf32> to vector<16x32xf32>
    %127 = arith.addf %125, %126 : vector<16x32xf32>
    %c0_43 = arith.constant 0 : index
    %c0_44 = arith.constant 0 : index
    %c0_45 = arith.constant 0 : index
    %128 = vector.load %arg10[%c0_43, %c0_44, %c0_45] : memref<1x32x64xf32, #tpu.memory_space<vmem>>, vector<1x32x64xf32>
    %129 = vector.shape_cast %128 : vector<1x32x64xf32> to vector<32x64xf32>
    %cst_46 = arith.constant dense<0.000000e+00> : vector<16x64xf32>
    %130 = tpu.matmul %127, %129, %cst_46 {dimension_numbers = #tpu.dot_dimension_numbers<[1], [0], [0], [1], [0, 0, 1, 1], [], []>} : vector<16x32xf32>, vector<32x64xf32>, vector<16x64xf32> -> vector<16x64xf32>
    %c0_47 = arith.constant 0 : index
    %c0_48 = arith.constant 0 : index
    %c0_49 = arith.constant 0 : index
    %131 = vector.load %arg11[%c0_47, %c0_48, %c0_49] : memref<1x1x64xf32, #tpu.memory_space<vmem>>, vector<1x1x64xf32>
    %132 = vector.shape_cast %131 : vector<1x1x64xf32> to vector<1x64xf32>
    %133 = vector.broadcast %132 : vector<1x64xf32> to vector<16x64xf32>
    %134 = arith.addf %130, %133 : vector<16x64xf32>
    %cst_50 = arith.constant 0.000000e+00 : f32
    %135 = vector.broadcast %cst_50 : f32 to vector<16x64xf32>
    %136 = arith.maximumf %134, %135 : vector<16x64xf32>
    %c0_51 = arith.constant 0 : index
    %c0_52 = arith.constant 0 : index
    %c0_53 = arith.constant 0 : index
    %137 = vector.load %arg12[%c0_51, %c0_52, %c0_53] : memref<1x64x32xf32, #tpu.memory_space<vmem>>, vector<1x64x32xf32>
    %138 = vector.shape_cast %137 : vector<1x64x32xf32> to vector<64x32xf32>
    %cst_54 = arith.constant dense<0.000000e+00> : vector<16x32xf32>
    %139 = tpu.matmul %136, %138, %cst_54 {dimension_numbers = #tpu.dot_dimension_numbers<[1], [0], [0], [1], [0, 0, 1, 1], [], []>} : vector<16x64xf32>, vector<64x32xf32>, vector<16x32xf32> -> vector<16x32xf32>
    %c0_55 = arith.constant 0 : index
    %c0_56 = arith.constant 0 : index
    %c0_57 = arith.constant 0 : index
    %140 = vector.load %arg13[%c0_55, %c0_56, %c0_57] : memref<1x1x32xf32, #tpu.memory_space<vmem>>, vector<1x1x32xf32>
    %141 = vector.shape_cast %140 : vector<1x1x32xf32> to vector<1x32xf32>
    %142 = vector.broadcast %141 : vector<1x32xf32> to vector<16x32xf32>
    %143 = arith.addf %139, %142 : vector<16x32xf32>
    %144 = arith.addf %143, %127 : vector<16x32xf32>
    %c0_58 = arith.constant 0 : index
    %c0_59 = arith.constant 0 : index
    %c0_60 = arith.constant 0 : index
    %145 = vector.load %arg14[%c0_58, %c0_59, %c0_60] : memref<1x1x32xf32, #tpu.memory_space<vmem>>, vector<1x1x32xf32>
    %146 = vector.shape_cast %145 : vector<1x1x32xf32> to vector<1x32xf32>
    %c0_61 = arith.constant 0 : index
    %c0_62 = arith.constant 0 : index
    %c0_63 = arith.constant 0 : index
    %147 = vector.load %arg15[%c0_61, %c0_62, %c0_63] : memref<1x1x32xf32, #tpu.memory_space<vmem>>, vector<1x1x32xf32>
    %148 = vector.shape_cast %147 : vector<1x1x32xf32> to vector<1x32xf32>
    %cst_64 = arith.constant dense<0.000000e+00> : vector<16xf32>
    %149 = vector.multi_reduction <add>, %144, %cst_64 [1] : vector<16x32xf32> to vector<16xf32>
    %150 = vector.shape_cast %149 : vector<16xf32> to vector<16x1xf32>
    %cst_65 = arith.constant 3.200000e+01 : f32
    %151 = vector.broadcast %cst_65 : f32 to vector<16x1xf32>
    %152 = arith.divf %150, %151 : vector<16x1xf32>
    %153 = vector.broadcast %152 : vector<16x1xf32> to vector<16x32xf32>
    %154 = arith.subf %144, %153 : vector<16x32xf32>
    %155 = arith.mulf %154, %154 : vector<16x32xf32>
    %cst_66 = arith.constant dense<0.000000e+00> : vector<16xf32>
    %156 = vector.multi_reduction <add>, %155, %cst_66 [1] : vector<16x32xf32> to vector<16xf32>
    %157 = vector.shape_cast %156 : vector<16xf32> to vector<16x1xf32>
    %cst_67 = arith.constant 3.200000e+01 : f32
    %158 = vector.broadcast %cst_67 : f32 to vector<16x1xf32>
    %159 = arith.divf %157, %158 : vector<16x1xf32>
    %160 = vector.broadcast %152 : vector<16x1xf32> to vector<16x32xf32>
    %161 = arith.subf %144, %160 : vector<16x32xf32>
    %cst_68 = arith.constant 9.99999974E-6 : f32
    %162 = vector.broadcast %cst_68 : f32 to vector<16x1xf32>
    %163 = arith.addf %159, %162 : vector<16x1xf32>
    %164 = math.rsqrt %163 : vector<16x1xf32>
    %165 = vector.broadcast %164 : vector<16x1xf32> to vector<16x32xf32>
    %166 = arith.mulf %161, %165 : vector<16x32xf32>
    %167 = vector.broadcast %146 : vector<1x32xf32> to vector<16x32xf32>
    %168 = arith.mulf %166, %167 : vector<16x32xf32>
    %169 = vector.broadcast %148 : vector<1x32xf32> to vector<16x32xf32>
    %170 = arith.addf %168, %169 : vector<16x32xf32>
    %c0_69 = arith.constant 0 : index
    %c0_70 = arith.constant 0 : index
    %171 = vector.load %arg17[%c0_69, %c0_70] : memref<16x32xf32, #tpu.memory_space<vmem>>, vector<16x32xf32>
    tpu.vector_store %arg17[%c0_69, %c0_70], %170 {strides = array<i32>} : memref<16x32xf32, #tpu.memory_space<vmem>>, vector<16x32xf32>,
    %c1_i32 = arith.constant 1 : i32
    %172 = arith.cmpi eq, %arg1, %c1_i32 : i32
    %173 = arith.extui %172 : i1 to i32
    %c0_i32_71 = arith.constant 0 : i32
    %174 = arith.cmpi ne, %173, %c0_i32_71 : i32
    scf.if %174 {
      %c0_72 = arith.constant 0 : index
      %c0_73 = arith.constant 0 : index
      %c0_74 = arith.constant 0 : index
      %175 = vector.load %arg16[%c0_72, %c0_73, %c0_74] : memref<1x16x32xf32, #tpu.memory_space<vmem>>, vector<1x16x32xf32>
      %176 = vector.shape_cast %175 : vector<1x16x32xf32> to vector<16x32xf32>
      %177 = vector.shape_cast %170 : vector<16x32xf32> to vector<1x16x32xf32>
      tpu.vector_store %arg16[%c0_72, %c0_73, %c0_74], %177 {strides = array<i32>} : memref<1x16x32xf32, #tpu.memory_space<vmem>>, vector<1x16x32xf32>,
    } else {
    }
    return
  }
  func.func @transform_0(%arg0: i32, %arg1: i32) -> (i32, i32, i32) {
    %c0_i32 = arith.constant 0 : i32
    %c0_i32_0 = arith.constant 0 : i32
    %c0_i32_1 = arith.constant 0 : i32
    return %arg0, %c0_i32, %c0_i32_0 : i32, i32, i32
  }
  func.func @transform_1(%arg0: i32, %arg1: i32) -> (i32, i32, i32, i32) {
    %c0_i32 = arith.constant 0 : i32
    %c0_i32_0 = arith.constant 0 : i32
    %c0_i32_1 = arith.constant 0 : i32
    %c0_i32_2 = arith.constant 0 : i32
    return %arg0, %c0_i32, %c0_i32_0, %c0_i32_1 : i32, i32, i32, i32
  }
  func.func @transform_2(%arg0: i32, %arg1: i32) -> (i32, i32, i32) {
    %c0_i32 = arith.constant 0 : i32
    %c0_i32_0 = arith.constant 0 : i32
    %c0_i32_1 = arith.constant 0 : i32
    return %arg1, %c0_i32, %c0_i32_0 : i32, i32, i32
  }
  func.func @transform_3(%arg0: i32, %arg1: i32) -> (i32, i32, i32) {
    %c0_i32 = arith.constant 0 : i32
    %c0_i32_0 = arith.constant 0 : i32
    %c0_i32_1 = arith.constant 0 : i32
    return %arg1, %c0_i32, %c0_i32_0 : i32, i32, i32
  }
  func.func @transform_4(%arg0: i32, %arg1: i32) -> (i32, i32, i32) {
    %c0_i32 = arith.constant 0 : i32
    %c0_i32_0 = arith.constant 0 : i32
    %c0_i32_1 = arith.constant 0 : i32
    return %arg1, %c0_i32, %c0_i32_0 : i32, i32, i32
  }
  func.func @transform_5(%arg0: i32, %arg1: i32) -> (i32, i32, i32) {
    %c0_i32 = arith.constant 0 : i32
    %c0_i32_0 = arith.constant 0 : i32
    %c0_i32_1 = arith.constant 0 : i32
    return %arg1, %c0_i32, %c0_i32_0 : i32, i32, i32
  }
  func.func @transform_6(%arg0: i32, %arg1: i32) -> (i32, i32, i32) {
    %c0_i32 = arith.constant 0 : i32
    %c0_i32_0 = arith.constant 0 : i32
    %c0_i32_1 = arith.constant 0 : i32
    return %arg1, %c0_i32, %c0_i32_0 : i32, i32, i32
  }
  func.func @transform_7(%arg0: i32, %arg1: i32) -> (i32, i32, i32) {
    %c0_i32 = arith.constant 0 : i32
    %c0_i32_0 = arith.constant 0 : i32
    %c0_i32_1 = arith.constant 0 : i32
    return %arg1, %c0_i32, %c0_i32_0 : i32, i32, i32
  }
  func.func @transform_8(%arg0: i32, %arg1: i32) -> (i32, i32, i32) {
    %c0_i32 = arith.constant 0 : i32
    %c0_i32_0 = arith.constant 0 : i32
    %c0_i32_1 = arith.constant 0 : i32
    return %arg1, %c0_i32, %c0_i32_0 : i32, i32, i32
  }
  func.func @transform_9(%arg0: i32, %arg1: i32) -> (i32, i32, i32) {
    %c0_i32 = arith.constant 0 : i32
    %c0_i32_0 = arith.constant 0 : i32
    %c0_i32_1 = arith.constant 0 : i32
    return %arg1, %c0_i32, %c0_i32_0 : i32, i32, i32
  }
  func.func @transform_10(%arg0: i32, %arg1: i32) -> (i32, i32, i32) {
    %c0_i32 = arith.constant 0 : i32
    %c0_i32_0 = arith.constant 0 : i32
    %c0_i32_1 = arith.constant 0 : i32
    return %arg1, %c0_i32, %c0_i32_0 : i32, i32, i32
  }
  func.func @transform_11(%arg0: i32, %arg1: i32) -> (i32, i32, i32) {
    %c0_i32 = arith.constant 0 : i32
    %c0_i32_0 = arith.constant 0 : i32
    %c0_i32_1 = arith.constant 0 : i32
    return %arg1, %c0_i32, %c0_i32_0 : i32, i32, i32
  }
  func.func @transform_12(%arg0: i32, %arg1: i32) -> (i32, i32, i32) {
    %c0_i32 = arith.constant 0 : i32
    %c0_i32_0 = arith.constant 0 : i32
    %c0_i32_1 = arith.constant 0 : i32
    return %arg1, %c0_i32, %c0_i32_0 : i32, i32, i32
  }
  func.func @transform_13(%arg0: i32, %arg1: i32) -> (i32, i32, i32) {
    %c0_i32 = arith.constant 0 : i32
    %c0_i32_0 = arith.constant 0 : i32
    %c0_i32_1 = arith.constant 0 : i32
    return %arg1, %c0_i32, %c0_i32_0 : i32, i32, i32
  }
  func.func @transform_14(%arg0: i32, %arg1: i32) -> (i32, i32, i32) {
    %c0_i32 = arith.constant 0 : i32
    %c0_i32_0 = arith.constant 0 : i32
    %c0_i32_1 = arith.constant 0 : i32
    return %arg0, %c0_i32, %c0_i32_0 : i32, i32, i32
  }
}

</mosaic_0001>

<llo_original>
// kernel: tpu_custom_call.1
$region0: #{tpu_custom_call.1}
  #allocation0 [shape = 'u32[]', space=smem, size = 0x4, offset = 0x4, fixed_abs, tag = 'smem constant byte address 0x4 - core index']
  #allocation1 [shape = 'u32[72,128]{1,0:T(1,128)}', space=vmem, size = 0x9000, scoped, tag = 'internal scratch']
  #allocation2 [shape = 'f32[16,32]{1,0:T(8,128)}', space=vmem, size = 0x2000, scoped, tag = 'scratch operand']
  #allocation3 [shape = 'f32[16,32]{1,0:T(8,128)}', space=vmem, size = 0x2000, scoped, tag = 'scratch operand']
  %s0 = inlined_call_operand.hbm [shape: f32[1,16,32], index: 0, kind: input, shape index: {}]
  %s1 = inlined_call_operand.hbm [shape: f32[1,2,1,8], index: 1, kind: input, shape index: {}]
  %s2 = inlined_call_operand.vmem [shape: f32[2,32,96], index: 2, kind: input, shape index: {}]
  %s3 = inlined_call_operand.vmem [shape: f32[2,1,96], index: 3, kind: input, shape index: {}]
  %s4 = inlined_call_operand.vmem [shape: f32[2,32,32], index: 4, kind: input, shape index: {}]
  %s5 = inlined_call_operand.hbm [shape: f32[2,1,32], index: 5, kind: input, shape index: {}]
  %s6 = inlined_call_operand.vmem [shape: f32[2,1,32], index: 6, kind: input, shape index: {}]
  %s7 = inlined_call_operand.hbm [shape: f32[2,1,32], index: 7, kind: input, shape index: {}]
  %s8 = inlined_call_operand.vmem [shape: f32[2,32,64], index: 8, kind: input, shape index: {}]
  %s9 = inlined_call_operand.vmem [shape: f32[2,1,64], index: 9, kind: input, shape index: {}]
  %s10 = inlined_call_operand.vmem [shape: f32[2,64,32], index: 10, kind: input, shape index: {}]
  %s11 = inlined_call_operand.vmem [shape: f32[2,1,32], index: 11, kind: input, shape index: {}]
  %s12 = inlined_call_operand.vmem [shape: f32[2,1,32], index: 12, kind: input, shape index: {}]
  %s13 = inlined_call_operand.hbm [shape: f32[2,1,32], index: 13, kind: input, shape index: {}]
  %s14 = inlined_call_operand.hbm [shape: f32[1,16,32], index: 14, kind: output, shape index: {}]
  %s15 = sld [smem:[#allocation0]]
  $region117: #{tpu_custom_call.1} parent=0
    _
  %s17 = ssub.s32 1, %s15
  %s18 = scalar_select 0, %s17, %s15
  $region1: #{tpu_custom_call.1} parent=0
    #allocation4 [shape = 'u8[8192]{0}', space=vmem, size = 0x2000, scoped, tag = 'input window, operand 0, single buffered']
    #allocation5 [shape = 's32[2]{0}', space=sflag, size = 0x8, scoped, tag = 'scoped memory for tpu_custom_call.1']
    #allocation6 [shape = 's32[2]{0}', space=sflag, size = 0x8, scoped, tag = 'scoped memory for tpu_custom_call.1']
    #allocation7 [shape = 'u8[1024]{0}', space=vmem, size = 0x400, scoped, tag = 'input window, operand 1, single buffered']
    #allocation8 [shape = 's32[1]{0}', space=sflag, size = 0x4, scoped, tag = 'scoped memory for tpu_custom_call.1']
    #allocation9 [shape = 'u8[1024]{0}', space=vmem, size = 0x400, scoped, tag = 'input window, operand 5']
    #allocation10 [shape = 'u8[1024]{0}', space=vmem, size = 0x400, scoped, tag = 'input window, operand 7']
    #allocation11 [shape = 'u8[1024]{0}', space=vmem, size = 0x400, scoped, tag = 'input window, operand 13']
    #allocation12 [shape = 'u8[8192]{0}', space=vmem, size = 0x2000, scoped, tag = 'output window, operand 0, single buffered']
    %19 = vsyncpa [#allocation5], 0
    %20 = vsyncpa [#allocation8], 0
    %21 = vsyncpa [#allocation6], 0
    loop: start=0, step=1, limit=4
    $region2: #{tpu_custom_call.1} parent=1 // loop_pre_header
      _
    $region3: #{tpu_custom_call.1} parent=1 // loop_header
      %s23 = sphi 0, %s27
      %p24 = scmp.ge.s32.totalorder %s23, 4
      %s30 = sphi 0, %s42
      %s31 = sphi 0, %s38
      %s32 = sphi 0, %s30
      %s33 = sphi 0, %s31
      %s34 = sphi 0, %s32
      %s35 = sphi 0, %s33
      %s45 = sphi 0, %s47
      %s48 = sphi 0, %s45
      %s49 = sphi 0, %s48
      %s65 = sphi 0, %s49
      %s71 = sphi 0, %s73
      %s74 = sphi 0, %s71
      %s75 = sphi 0, %s74
      %s91 = sphi 0, %s75
      %s97 = sphi 0, %s99
      %s100 = sphi 0, %s97
      %s101 = sphi 0, %s100
      %s117 = sphi 0, %s101
      %s123 = sphi 0, %s125
      %s126 = sphi 0, %s123
      %s127 = sphi 0, %s126
      %s143 = sphi 0, %s127
      %s149 = sphi 0, %s151
      %s152 = sphi 0, %s149
      %s153 = sphi 0, %s152
      %s169 = sphi 0, %s153
      %s175 = sphi 0, %s177
      %s178 = sphi 0, %s175
      %s179 = sphi 0, %s178
      %s195 = sphi 0, %s179
      %s201 = sphi 0, %s203
      %s204 = sphi 0, %s201
      %s205 = sphi 0, %s204
      %s221 = sphi 0, %s205
      %s227 = sphi 0, %s229
      %s230 = sphi 0, %s227
      %s231 = sphi 0, %s230
      %s247 = sphi 0, %s231
      %s253 = sphi 0, %s255
      %s256 = sphi 0, %s253
      %s257 = sphi 0, %s256
      %s273 = sphi 0, %s257
      %s279 = sphi 0, %s281
      %s282 = sphi 0, %s279
      %s283 = sphi 0, %s282
      %s299 = sphi 0, %s283
      %s305 = sphi 0, %s307
      %s308 = sphi 0, %s305
      %s309 = sphi 0, %s308
      %s325 = sphi 0, %s309
      %s331 = sphi 0, %s333
      %s334 = sphi 0, %s331
      %s335 = sphi 0, %s334
      %s351 = sphi 0, %s335
      %s357 = sphi 0, %s359
      %s360 = sphi 0, %s357
      %s361 = sphi 0, %s360
      %s377 = sphi 0, %s361
      %s383 = sphi 0, %s385
      %s386 = sphi 0, %s383
      %s387 = sphi 0, %s386
      %s403 = sphi 0, %s387
      %s409 = sphi 0, %s411
      %s412 = sphi 0, %s409
      %s413 = sphi 0, %s412
      %s429 = sphi 0, %s413
    $region4: #{tpu_custom_call.1} parent=1 // loop_header_branch
      %26 = sbr.rel (%p24) target = $region8
    $region5: #{tpu_custom_call.1} parent=1 // loop_body
      %s28 = ssub.s32 %s23, 1
      %s29 = ssub.s32 %s23, 2
      %s36 = sadd.s32 1, %s31
      %p37 = scmp.ge.s32.totalorder %s36, 2
      %s38 = scalar_select %p37, 0, %s36
      %s39 = sadd.s32 1, %s30
      %s40 = scalar_select %p37, %s39, %s30
      %p41 = scmp.ge.s32.totalorder %s40, 1
      %s42 = scalar_select %p41, 0, %s40
      %s43 = ssub.s32 %s30, %s42
      %p44 = scmp.eq.s32.totalorder %s43, 0
      %s46 = sadd.s32 %s45, 1
      %s47 = scalar_select %p44, %s45, %s46
      %p50 = pneg %p44
      %p51 = scmp.eq.s32.totalorder %s23, 1
      %p52 = por %p50, %p51
      %p53 = scmp.ne.s32.totalorder %s45, %s48
      %p54 = scmp.eq.s32.totalorder %s23, 0
      %p55 = por %p53, %p54
      %p56 = scmp.ne.s32.totalorder %s45, %s48
      %p57 = scmp.eq.s32.totalorder %s28, 1
      %p58 = por %p56, %p57
      %p59 = scmp.ne.s32.totalorder %s48, %s49
      %p60 = scmp.eq.s32.totalorder %s28, 0
      %p61 = por %p59, %p60
      %p62 = scmp.ne.s32.totalorder %s48, %s49
      %p63 = scmp.eq.s32.totalorder %s29, 1
      %p64 = por %p62, %p63
      %p66 = scmp.ne.s32.totalorder %s49, %s65
      %p67 = scmp.eq.s32.totalorder %s29, 0
      %p68 = por %p66, %p67
      %s69 = ssub.s32 %s30, %s42
      %p70 = scmp.eq.s32.totalorder %s69, 0
      %s72 = sadd.s32 %s71, 1
      %s73 = scalar_select %p70, %s71, %s72
      %p76 = pneg %p70
      %p77 = scmp.eq.s32.totalorder %s23, 1
      %p78 = por %p76, %p77
      %p79 = scmp.ne.s32.totalorder %s71, %s74
      %p80 = scmp.eq.s32.totalorder %s23, 0
      %p81 = por %p79, %p80
      %p82 = scmp.ne.s32.totalorder %s71, %s74
      %p83 = scmp.eq.s32.totalorder %s28, 1
      %p84 = por %p82, %p83
      %p85 = scmp.ne.s32.totalorder %s74, %s75
      %p86 = scmp.eq.s32.totalorder %s28, 0
      %p87 = por %p85, %p86
      %p88 = scmp.ne.s32.totalorder %s74, %s75
      %p89 = scmp.eq.s32.totalorder %s29, 1
      %p90 = por %p88, %p89
      %p92 = scmp.ne.s32.totalorder %s75, %s91
      %p93 = scmp.eq.s32.totalorder %s29, 0
      %p94 = por %p92, %p93
      %s95 = ssub.s32 %s31, %s38
      %p96 = scmp.eq.s32.totalorder %s95, 0
      %s98 = sadd.s32 %s97, 1
      %s99 = scalar_select %p96, %s97, %s98
      %p102 = pneg %p96
      %p103 = scmp.eq.s32.totalorder %s23, 1
      %p104 = por %p102, %p103
      %p105 = scmp.ne.s32.totalorder %s97, %s100
      %p106 = scmp.eq.s32.totalorder %s23, 0
      %p107 = por %p105, %p106
      %p108 = scmp.ne.s32.totalorder %s97, %s100
      %p109 = scmp.eq.s32.totalorder %s28, 1
      %p110 = por %p108, %p109
      %p111 = scmp.ne.s32.totalorder %s100, %s101
      %p112 = scmp.eq.s32.totalorder %s28, 0
      %p113 = por %p111, %p112
      %p114 = scmp.ne.s32.totalorder %s100, %s101
      %p115 = scmp.eq.s32.totalorder %s29, 1
      %p116 = por %p114, %p115
      %p118 = scmp.ne.s32.totalorder %s101, %s117
      %p119 = scmp.eq.s32.totalorder %s29, 0
      %p120 = por %p118, %p119
      %s121 = ssub.s32 %s31, %s38
      %p122 = scmp.eq.s32.totalorder %s121, 0
      %s124 = sadd.s32 %s123, 1
      %s125 = scalar_select %p122, %s123, %s124
      %p128 = pneg %p122
      %p129 = scmp.eq.s32.totalorder %s23, 1
      %p130 = por %p128, %p129
      %p131 = scmp.ne.s32.totalorder %s123, %s126
      %p132 = scmp.eq.s32.totalorder %s23, 0
      %p133 = por %p131, %p132
      %p134 = scmp.ne.s32.totalorder %s123, %s126
      %p135 = scmp.eq.s32.totalorder %s28, 1
      %p136 = por %p134, %p135
      %p137 = scmp.ne.s32.totalorder %s126, %s127
      %p138 = scmp.eq.s32.totalorder %s28, 0
      %p139 = por %p137, %p138
      %p140 = scmp.ne.s32.totalorder %s126, %s127
      %p141 = scmp.eq.s32.totalorder %s29, 1
      %p142 = por %p140, %p141
      %p144 = scmp.ne.s32.totalorder %s127, %s143
      %p145 = scmp.eq.s32.totalorder %s29, 0
      %p146 = por %p144, %p145
      %s147 = ssub.s32 %s31, %s38
      %p148 = scmp.eq.s32.totalorder %s147, 0
      %s150 = sadd.s32 %s149, 1
      %s151 = scalar_select %p148, %s149, %s150
      %p154 = pneg %p148
      %p155 = scmp.eq.s32.totalorder %s23, 1
      %p156 = por %p154, %p155
      %p157 = scmp.ne.s32.totalorder %s149, %s152
      %p158 = scmp.eq.s32.totalorder %s23, 0
      %p159 = por %p157, %p158
      %p160 = scmp.ne.s32.totalorder %s149, %s152
      %p161 = scmp.eq.s32.totalorder %s28, 1
      %p162 = por %p160, %p161
      %p163 = scmp.ne.s32.totalorder %s152, %s153
      %p164 = scmp.eq.s32.totalorder %s28, 0
      %p165 = por %p163, %p164
      %p166 = scmp.ne.s32.totalorder %s152, %s153
      %p167 = scmp.eq.s32.totalorder %s29, 1
      %p168 = por %p166, %p167
      %p170 = scmp.ne.s32.totalorder %s153, %s169
      %p171 = scmp.eq.s32.totalorder %s29, 0
      %p172 = por %p170, %p171
      %s173 = ssub.s32 %s31, %s38
      %p174 = scmp.eq.s32.totalorder %s173, 0
      %s176 = sadd.s32 %s175, 1
      %s177 = scalar_select %p174, %s175, %s176
      %p180 = pneg %p174
      %p181 = scmp.eq.s32.totalorder %s23, 1
      %p182 = por %p180, %p181
      %p183 = scmp.ne.s32.totalorder %s175, %s178
      %p184 = scmp.eq.s32.totalorder %s23, 0
      %p185 = por %p183, %p184
      %p186 = scmp.ne.s32.totalorder %s175, %s178
      %p187 = scmp.eq.s32.totalorder %s28, 1
      %p188 = por %p186, %p187
      %p189 = scmp.ne.s32.totalorder %s178, %s179
      %p190 = scmp.eq.s32.totalorder %s28, 0
      %p191 = por %p189, %p190
      %p192 = scmp.ne.s32.totalorder %s178, %s179
      %p193 = scmp.eq.s32.totalorder %s29, 1
      %p194 = por %p192, %p193
      %p196 = scmp.ne.s32.totalorder %s179, %s195
      %p197 = scmp.eq.s32.totalorder %s29, 0
      %p198 = por %p196, %p197
      %s199 = ssub.s32 %s31, %s38
      %p200 = scmp.eq.s32.totalorder %s199, 0
      %s202 = sadd.s32 %s201, 1
      %s203 = scalar_select %p200, %s201, %s202
      %p206 = pneg %p200
      %p207 = scmp.eq.s32.totalorder %s23, 1
      %p208 = por %p206, %p207
      %p209 = scmp.ne.s32.totalorder %s201, %s204
      %p210 = scmp.eq.s32.totalorder %s23, 0
      %p211 = por %p209, %p210
      %p212 = scmp.ne.s32.totalorder %s201, %s204
      %p213 = scmp.eq.s32.totalorder %s28, 1
      %p214 = por %p212, %p213
      %p215 = scmp.ne.s32.totalorder %s204, %s205
      %p216 = scmp.eq.s32.totalorder %s28, 0
      %p217 = por %p215, %p216
      %p218 = scmp.ne.s32.totalorder %s204, %s205
      %p219 = scmp.eq.s32.totalorder %s29, 1
      %p220 = por %p218, %p219
      %p222 = scmp.ne.s32.totalorder %s205, %s221
      %p223 = scmp.eq.s32.totalorder %s29, 0
      %p224 = por %p222, %p223
      %s225 = ssub.s32 %s31, %s38
      %p226 = scmp.eq.s32.totalorder %s225, 0
      %s228 = sadd.s32 %s227, 1
      %s229 = scalar_select %p226, %s227, %s228
      %p232 = pneg %p226
      %p233 = scmp.eq.s32.totalorder %s23, 1
      %p234 = por %p232, %p233
      %p235 = scmp.ne.s32.totalorder %s227, %s230
      %p236 = scmp.eq.s32.totalorder %s23, 0
      %p237 = por %p235, %p236
      %p238 = scmp.ne.s32.totalorder %s227, %s230
      %p239 = scmp.eq.s32.totalorder %s28, 1
      %p240 = por %p238, %p239
      %p241 = scmp.ne.s32.totalorder %s230, %s231
      %p242 = scmp.eq.s32.totalorder %s28, 0
      %p243 = por %p241, %p242
      %p244 = scmp.ne.s32.totalorder %s230, %s231
      %p245 = scmp.eq.s32.totalorder %s29, 1
      %p246 = por %p244, %p245
      %p248 = scmp.ne.s32.totalorder %s231, %s247
      %p249 = scmp.eq.s32.totalorder %s29, 0
      %p250 = por %p248, %p249
      %s251 = ssub.s32 %s31, %s38
      %p252 = scmp.eq.s32.totalorder %s251, 0
      %s254 = sadd.s32 %s253, 1
      %s255 = scalar_select %p252, %s253, %s254
      %p258 = pneg %p252
      %p259 = scmp.eq.s32.totalorder %s23, 1
      %p260 = por %p258, %p259
      %p261 = scmp.ne.s32.totalorder %s253, %s256
      %p262 = scmp.eq.s32.totalorder %s23, 0
      %p263 = por %p261, %p262
      %p264 = scmp.ne.s32.totalorder %s253, %s256
      %p265 = scmp.eq.s32.totalorder %s28, 1
      %p266 = por %p264, %p265
      %p267 = scmp.ne.s32.totalorder %s256, %s257
      %p268 = scmp.eq.s32.totalorder %s28, 0
      %p269 = por %p267, %p268
      %p270 = scmp.ne.s32.totalorder %s256, %s257
      %p271 = scmp.eq.s32.totalorder %s29, 1
      %p272 = por %p270, %p271
      %p274 = scmp.ne.s32.totalorder %s257, %s273
      %p275 = scmp.eq.s32.totalorder %s29, 0
      %p276 = por %p274, %p275
      %s277 = ssub.s32 %s31, %s38
      %p278 = scmp.eq.s32.totalorder %s277, 0
      %s280 = sadd.s32 %s279, 1
      %s281 = scalar_select %p278, %s279, %s280
      %p284 = pneg %p278
      %p285 = scmp.eq.s32.totalorder %s23, 1
      %p286 = por %p284, %p285
      %p287 = scmp.ne.s32.totalorder %s279, %s282
      %p288 = scmp.eq.s32.totalorder %s23, 0
      %p289 = por %p287, %p288
      %p290 = scmp.ne.s32.totalorder %s279, %s282
      %p291 = scmp.eq.s32.totalorder %s28, 1
      %p292 = por %p290, %p291
      %p293 = scmp.ne.s32.totalorder %s282, %s283
      %p294 = scmp.eq.s32.totalorder %s28, 0
      %p295 = por %p293, %p294
      %p296 = scmp.ne.s32.totalorder %s282, %s283
      %p297 = scmp.eq.s32.totalorder %s29, 1
      %p298 = por %p296, %p297
      %p300 = scmp.ne.s32.totalorder %s283, %s299
      %p301 = scmp.eq.s32.totalorder %s29, 0
      %p302 = por %p300, %p301
      %s303 = ssub.s32 %s31, %s38
      %p304 = scmp.eq.s32.totalorder %s303, 0
      %s306 = sadd.s32 %s305, 1
      %s307 = scalar_select %p304, %s305, %s306
      %p310 = pneg %p304
      %p311 = scmp.eq.s32.totalorder %s23, 1
      %p312 = por %p310, %p311
      %p313 = scmp.ne.s32.totalorder %s305, %s308
      %p314 = scmp.eq.s32.totalorder %s23, 0
      %p315 = por %p313, %p314
      %p316 = scmp.ne.s32.totalorder %s305, %s308
      %p317 = scmp.eq.s32.totalorder %s28, 1
      %p318 = por %p316, %p317
      %p319 = scmp.ne.s32.totalorder %s308, %s309
      %p320 = scmp.eq.s32.totalorder %s28, 0
      %p321 = por %p319, %p320
      %p322 = scmp.ne.s32.totalorder %s308, %s309
      %p323 = scmp.eq.s32.totalorder %s29, 1
      %p324 = por %p322, %p323
      %p326 = scmp.ne.s32.totalorder %s309, %s325
      %p327 = scmp.eq.s32.totalorder %s29, 0
      %p328 = por %p326, %p327
      %s329 = ssub.s32 %s31, %s38
      %p330 = scmp.eq.s32.totalorder %s329, 0
      %s332 = sadd.s32 %s331, 1
      %s333 = scalar_select %p330, %s331, %s332
      %p336 = pneg %p330
      %p337 = scmp.eq.s32.totalorder %s23, 1
      %p338 = por %p336, %p337
      %p339 = scmp.ne.s32.totalorder %s331, %s334
      %p340 = scmp.eq.s32.totalorder %s23, 0
      %p341 = por %p339, %p340
      %p342 = scmp.ne.s32.totalorder %s331, %s334
      %p343 = scmp.eq.s32.totalorder %s28, 1
      %p344 = por %p342, %p343
      %p345 = scmp.ne.s32.totalorder %s334, %s335
      %p346 = scmp.eq.s32.totalorder %s28, 0
      %p347 = por %p345, %p346
      %p348 = scmp.ne.s32.totalorder %s334, %s335
      %p349 = scmp.eq.s32.totalorder %s29, 1
      %p350 = por %p348, %p349
      %p352 = scmp.ne.s32.totalorder %s335, %s351
      %p353 = scmp.eq.s32.totalorder %s29, 0
      %p354 = por %p352, %p353
      %s355 = ssub.s32 %s31, %s38
      %p356 = scmp.eq.s32.totalorder %s355, 0
      %s358 = sadd.s32 %s357, 1
      %s359 = scalar_select %p356, %s357, %s358
      %p362 = pneg %p356
      %p363 = scmp.eq.s32.totalorder %s23, 1
      %p364 = por %p362, %p363
      %p365 = scmp.ne.s32.totalorder %s357, %s360
      %p366 = scmp.eq.s32.totalorder %s23, 0
      %p367 = por %p365, %p366
      %p368 = scmp.ne.s32.totalorder %s357, %s360
      %p369 = scmp.eq.s32.totalorder %s28, 1
      %p370 = por %p368, %p369
      %p371 = scmp.ne.s32.totalorder %s360, %s361
      %p372 = scmp.eq.s32.totalorder %s28, 0
      %p373 = por %p371, %p372
      %p374 = scmp.ne.s32.totalorder %s360, %s361
      %p375 = scmp.eq.s32.totalorder %s29, 1
      %p376 = por %p374, %p375
      %p378 = scmp.ne.s32.totalorder %s361, %s377
      %p379 = scmp.eq.s32.totalorder %s29, 0
      %p380 = por %p378, %p379
      %s381 = ssub.s32 %s31, %s38
      %p382 = scmp.eq.s32.totalorder %s381, 0
      %s384 = sadd.s32 %s383, 1
      %s385 = scalar_select %p382, %s383, %s384
      %p388 = pneg %p382
      %p389 = scmp.eq.s32.totalorder %s23, 1
      %p390 = por %p388, %p389
      %p391 = scmp.ne.s32.totalorder %s383, %s386
      %p392 = scmp.eq.s32.totalorder %s23, 0
      %p393 = por %p391, %p392
      %p394 = scmp.ne.s32.totalorder %s383, %s386
      %p395 = scmp.eq.s32.totalorder %s28, 1
      %p396 = por %p394, %p395
      %p397 = scmp.ne.s32.totalorder %s386, %s387
      %p398 = scmp.eq.s32.totalorder %s28, 0
      %p399 = por %p397, %p398
      %p400 = scmp.ne.s32.totalorder %s386, %s387
      %p401 = scmp.eq.s32.totalorder %s29, 1
      %p402 = por %p400, %p401
      %p404 = scmp.ne.s32.totalorder %s387, %s403
      %p405 = scmp.eq.s32.totalorder %s29, 0
      %p406 = por %p404, %p405
      %s407 = ssub.s32 %s30, %s42
      %p408 = scmp.eq.s32.totalorder %s407, 0
      %s410 = sadd.s32 %s409, 1
      %s411 = scalar_select %p408, %s409, %s410
      %p414 = pneg %p408
      %p415 = scmp.eq.s32.totalorder %s23, 1
      %p416 = por %p414, %p415
      %p417 = scmp.ne.s32.totalorder %s409, %s412
      %p418 = scmp.eq.s32.totalorder %s23, 0
      %p419 = por %p417, %p418
      %p420 = scmp.ne.s32.totalorder %s409, %s412
      %p421 = scmp.eq.s32.totalorder %s28, 1
      %p422 = por %p420, %p421
      %p423 = scmp.ne.s32.totalorder %s412, %s413
      %p424 = scmp.eq.s32.totalorder %s28, 0
      %p425 = por %p423, %p424
      %p426 = scmp.ne.s32.totalorder %s412, %s413
      %p427 = scmp.eq.s32.totalorder %s29, 1
      %p428 = por %p426, %p427
      %p430 = scmp.ne.s32.totalorder %s413, %s429
      %p431 = scmp.eq.s32.totalorder %s29, 0
      %p432 = por %p430, %p431
      %p433 = scmp.le.s32.totalorder 1, %s23
      %p434 = scmp.lt.s32.totalorder %s23, 3
      %p435 = pnand %p433, %p434
      %p436 = pneg %p435
      // Predicated region
      $region9: #{tpu_custom_call.1} parent=5 // pred_check
        _
      $region10: #{tpu_custom_call.1} parent=5 // pred_check_branch
        %438 = sbr.rel (%p435) target = $region12
      $region11: #{tpu_custom_call.1} parent=5 // pred_region
        %s439 = ssub.s32 %s23, 1
        // Predicated region
        $region13: #{tpu_custom_call.1} parent=11 // pred_check
          %p440 = pneg %p61
        $region14: #{tpu_custom_call.1} parent=11 // pred_check_branch
          %442 = sbr.rel (%p440) target = $region16
        $region15: #{tpu_custom_call.1} parent=11 // pred_region
          %444 = vsyncadd [#allocation5], 0
          %s445 = smul.addr %s32, 2
          %s446 = smul.addr %s445, 8
          %s447 = scalar_lea.hbm %s0, %s446
          %s448 = sshll.u32 %s447, 4
          %s449 = int_to_ptr.hbm [resolvable:$true] %s448
          %s450 = sshll.u32 [#allocation4], 4
          %s451 = int_to_ptr.vmem [resolvable:$true] %s450
          %456 = dma.hbm_to_vmem [thread:$0]  %s449, 256, %s451, [#allocation5], 128, 128, 8
        $region16: #{tpu_custom_call.1} parent=11 // pred_fallthru
          _
        // Predicated region
        $region17: #{tpu_custom_call.1} parent=11 // pred_check
          %p457 = pneg %p87
        $region18: #{tpu_custom_call.1} parent=11 // pred_check_branch
          %459 = sbr.rel (%p457) target = $region20
        $region19: #{tpu_custom_call.1} parent=11 // pred_region
          %461 = vsyncadd [#allocation8], 0
          %s462 = smul.addr %s32, 2
          %s463 = scalar_lea.hbm %s1, %s462
          %s464 = sshll.u32 %s463, 4
          %s465 = int_to_ptr.hbm [resolvable:$true] %s464
          %s466 = sshll.u32 [#allocation7], 4
          %s467 = int_to_ptr.vmem [resolvable:$true] %s466
          %472 = dma.hbm_to_vmem [thread:$0]  %s465, 32, %s467, [#allocation8], 16, 16, 1
        $region20: #{tpu_custom_call.1} parent=11 // pred_fallthru
          _
      $region12: #{tpu_custom_call.1} parent=5 // pred_fallthru
        _
      %p473 = scmp.lt.s32.totalorder %s23, 2
      // Predicated region
      $region21: #{tpu_custom_call.1} parent=5 // pred_check
        %p474 = pneg %p473
      $region22: #{tpu_custom_call.1} parent=5 // pred_check_branch
        %476 = sbr.rel (%p474) target = $region24
      $region23: #{tpu_custom_call.1} parent=5 // pred_region
        // Predicated region
        $region25: #{tpu_custom_call.1} parent=23 // pred_check
          %p477 = pneg %p107
        $region26: #{tpu_custom_call.1} parent=23 // pred_check_branch
          %479 = sbr.rel (%p477) target = $region28
        $region27: #{tpu_custom_call.1} parent=23 // pred_region
          %p480 = scmp.lt.s32.totalorder %s31, 1
          %s481 = scalar_select %p480, %s31, 1
          %s482 = smul.addr %s481, 4
          %s483 = smul.addr %s482, 8
          %s484 = scalar_lea.vmem %s2, %s483
        $region28: #{tpu_custom_call.1} parent=23 // pred_fallthru
          _
        // Predicated region
        $region29: #{tpu_custom_call.1} parent=23 // pred_check
          %p485 = pneg %p133
        $region30: #{tpu_custom_call.1} parent=23 // pred_check_branch
          %487 = sbr.rel (%p485) target = $region32
        $region31: #{tpu_custom_call.1} parent=23 // pred_region
          %p488 = scmp.lt.s32.totalorder %s31, 1
          %s489 = scalar_select %p488, %s31, 1
          %s490 = scalar_lea.vmem %s3, %s489
        $region32: #{tpu_custom_call.1} parent=23 // pred_fallthru
          _
        // Predicated region
        $region33: #{tpu_custom_call.1} parent=23 // pred_check
          %p491 = pneg %p159
        $region34: #{tpu_custom_call.1} parent=23 // pred_check_branch
          %493 = sbr.rel (%p491) target = $region36
        $region35: #{tpu_custom_call.1} parent=23 // pred_region
          %p494 = scmp.lt.s32.totalorder %s31, 1
          %s495 = scalar_select %p494, %s31, 1
          %s496 = smul.addr %s495, 4
          %s497 = smul.addr %s496, 8
          %s498 = scalar_lea.vmem %s4, %s497
        $region36: #{tpu_custom_call.1} parent=23 // pred_fallthru
          _
        // Predicated region
        $region37: #{tpu_custom_call.1} parent=23 // pred_check
          %p499 = pneg %p185
        $region38: #{tpu_custom_call.1} parent=23 // pred_check_branch
          %501 = sbr.rel (%p499) target = $region40
        $region39: #{tpu_custom_call.1} parent=23 // pred_region
          %s502 = sand.u32 %s23, 1
          %s503 = scalar_lea.sflag [#allocation5], %s502
          %s504 = sand.u32 %s175, 1
          %s505 = scalar_lea.vmem [#allocation9], %s504
          %507 = vsyncadd %s503, 0
          %s508 = scalar_lea.hbm %s5, %s31
          %s510 = sshll.u32 %s508, 4
          %s511 = int_to_ptr.hbm [resolvable:$true] %s510
          %s512 = sshll.u32 %s505, 4
          %s513 = int_to_ptr.vmem [resolvable:$true] %s512
          %515 = dma.hbm_to_vmem [thread:$0]  %s511, 16, %s513, %s503
        $region40: #{tpu_custom_call.1} parent=23 // pred_fallthru
          _
        // Predicated region
        $region41: #{tpu_custom_call.1} parent=23 // pred_check
          %p516 = pneg %p211
        $region42: #{tpu_custom_call.1} parent=23 // pred_check_branch
          %518 = sbr.rel (%p516) target = $region44
        $region43: #{tpu_custom_call.1} parent=23 // pred_region
          %p519 = scmp.lt.s32.totalorder %s31, 1
          %s520 = scalar_select %p519, %s31, 1
          %s521 = scalar_lea.vmem %s6, %s520
        $region44: #{tpu_custom_call.1} parent=23 // pred_fallthru
          _
        // Predicated region
        $region45: #{tpu_custom_call.1} parent=23 // pred_check
          %p522 = pneg %p237
        $region46: #{tpu_custom_call.1} parent=23 // pred_check_branch
          %524 = sbr.rel (%p522) target = $region48
        $region47: #{tpu_custom_call.1} parent=23 // pred_region
          %s525 = sand.u32 %s23, 1
          %s526 = scalar_lea.sflag [#allocation5], %s525
          %s527 = sand.u32 %s227, 1
          %s528 = scalar_lea.vmem [#allocation10], %s527
          %530 = vsyncadd %s526, 0
          %s531 = scalar_lea.hbm %s7, %s31
          %s533 = sshll.u32 %s531, 4
          %s534 = int_to_ptr.hbm [resolvable:$true] %s533
          %s535 = sshll.u32 %s528, 4
          %s536 = int_to_ptr.vmem [resolvable:$true] %s535
          %538 = dma.hbm_to_vmem [thread:$0]  %s534, 16, %s536, %s526
        $region48: #{tpu_custom_call.1} parent=23 // pred_fallthru
          _
        // Predicated region
        $region49: #{tpu_custom_call.1} parent=23 // pred_check
          %p539 = pneg %p263
        $region50: #{tpu_custom_call.1} parent=23 // pred_check_branch
          %541 = sbr.rel (%p539) target = $region52
        $region51: #{tpu_custom_call.1} parent=23 // pred_region
          %p542 = scmp.lt.s32.totalorder %s31, 1
          %s543 = scalar_select %p542, %s31, 1
          %s544 = smul.addr %s543, 4
          %s545 = smul.addr %s544, 8
          %s546 = scalar_lea.vmem %s8, %s545
        $region52: #{tpu_custom_call.1} parent=23 // pred_fallthru
          _
        // Predicated region
        $region53: #{tpu_custom_call.1} parent=23 // pred_check
          %p547 = pneg %p289
        $region54: #{tpu_custom_call.1} parent=23 // pred_check_branch
          %549 = sbr.rel (%p547) target = $region56
        $region55: #{tpu_custom_call.1} parent=23 // pred_region
          %p550 = scmp.lt.s32.totalorder %s31, 1
          %s551 = scalar_select %p550, %s31, 1
          %s552 = scalar_lea.vmem %s9, %s551
        $region56: #{tpu_custom_call.1} parent=23 // pred_fallthru
          _
        // Predicated region
        $region57: #{tpu_custom_call.1} parent=23 // pred_check
          %p553 = pneg %p315
        $region58: #{tpu_custom_call.1} parent=23 // pred_check_branch
          %555 = sbr.rel (%p553) target = $region60
        $region59: #{tpu_custom_call.1} parent=23 // pred_region
          %p556 = scmp.lt.s32.totalorder %s31, 1
          %s557 = scalar_select %p556, %s31, 1
          %s558 = smul.addr %s557, 8
          %s559 = smul.addr %s558, 8
          %s560 = scalar_lea.vmem %s10, %s559
        $region60: #{tpu_custom_call.1} parent=23 // pred_fallthru
          _
        // Predicated region
        $region61: #{tpu_custom_call.1} parent=23 // pred_check
          %p561 = pneg %p341
        $region62: #{tpu_custom_call.1} parent=23 // pred_check_branch
          %563 = sbr.rel (%p561) target = $region64
        $region63: #{tpu_custom_call.1} parent=23 // pred_region
          %p564 = scmp.lt.s32.totalorder %s31, 1
          %s565 = scalar_select %p564, %s31, 1
          %s566 = scalar_lea.vmem %s11, %s565
        $region64: #{tpu_custom_call.1} parent=23 // pred_fallthru
          _
        // Predicated region
        $region65: #{tpu_custom_call.1} parent=23 // pred_check
          %p567 = pneg %p367
        $region66: #{tpu_custom_call.1} parent=23 // pred_check_branch
          %569 = sbr.rel (%p567) target = $region68
        $region67: #{tpu_custom_call.1} parent=23 // pred_region
          %p570 = scmp.lt.s32.totalorder %s31, 1
          %s571 = scalar_select %p570, %s31, 1
          %s572 = scalar_lea.vmem %s12, %s571
        $region68: #{tpu_custom_call.1} parent=23 // pred_fallthru
          _
        // Predicated region
        $region69: #{tpu_custom_call.1} parent=23 // pred_check
          %p573 = pneg %p393
        $region70: #{tpu_custom_call.1} parent=23 // pred_check_branch
          %575 = sbr.rel (%p573) target = $region72
        $region71: #{tpu_custom_call.1} parent=23 // pred_region
          %s576 = sand.u32 %s23, 1
          %s577 = scalar_lea.sflag [#allocation5], %s576
          %s578 = sand.u32 %s383, 1
          %s579 = scalar_lea.vmem [#allocation11], %s578
          %581 = vsyncadd %s577, 0
          %s582 = scalar_lea.hbm %s13, %s31
          %s584 = sshll.u32 %s582, 4
          %s585 = int_to_ptr.hbm [resolvable:$true] %s584
          %s586 = sshll.u32 %s579, 4
          %s587 = int_to_ptr.vmem [resolvable:$true] %s586
          %589 = dma.hbm_to_vmem [thread:$0]  %s585, 16, %s587, %s577
        $region72: #{tpu_custom_call.1} parent=23 // pred_fallthru
          _
      $region24: #{tpu_custom_call.1} parent=5 // pred_fallthru
        _
      %p590 = scmp.le.s32.totalorder 1, %s23
      %p591 = scmp.lt.s32.totalorder %s23, 3
      %p592 = pnand %p590, %p591
      %p593 = pneg %p592
      // Predicated region
      $region73: #{tpu_custom_call.1} parent=5 // pred_check
        _
      $region74: #{tpu_custom_call.1} parent=5 // pred_check_branch
        %595 = sbr.rel (%p592) target = $region76
      $region75: #{tpu_custom_call.1} parent=5 // pred_region
        %s596 = ssub.s32 %s23, 1
        // Predicated region
        $region77: #{tpu_custom_call.1} parent=75 // pred_check
          %p597 = pneg %p61
        $region78: #{tpu_custom_call.1} parent=75 // pred_check_branch
          %599 = sbr.rel (%p597) target = $region80
        $region79: #{tpu_custom_call.1} parent=75 // pred_region
          %601 = dma.done [#allocation5], 256
        $region80: #{tpu_custom_call.1} parent=75 // pred_fallthru
          _
        // Predicated region
        $region81: #{tpu_custom_call.1} parent=75 // pred_check
          %p602 = pneg %p87
        $region82: #{tpu_custom_call.1} parent=75 // pred_check_branch
          %604 = sbr.rel (%p602) target = $region84
        $region83: #{tpu_custom_call.1} parent=75 // pred_region
          %606 = dma.done [#allocation8], 32
        $region84: #{tpu_custom_call.1} parent=75 // pred_fallthru
          _
        %s607 = sand.u32 %s28, 1
        %s608 = scalar_lea.sflag [#allocation5], %s607
        %s609 = sand.u32 %s178, 1
        %s610 = scalar_lea.vmem [#allocation9], %s609
        // Predicated region
        $region85: #{tpu_custom_call.1} parent=75 // pred_check
          %p611 = pneg %p191
        $region86: #{tpu_custom_call.1} parent=75 // pred_check_branch
          %613 = sbr.rel (%p611) target = $region88
        $region87: #{tpu_custom_call.1} parent=75 // pred_region
          %615 = dma.done %s608, 16
        $region88: #{tpu_custom_call.1} parent=75 // pred_fallthru
          _
        %s616 = sand.u32 %s28, 1
        %s617 = scalar_lea.sflag [#allocation5], %s616
        %s618 = sand.u32 %s230, 1
        %s619 = scalar_lea.vmem [#allocation10], %s618
        // Predicated region
        $region89: #{tpu_custom_call.1} parent=75 // pred_check
          %p620 = pneg %p243
        $region90: #{tpu_custom_call.1} parent=75 // pred_check_branch
          %622 = sbr.rel (%p620) target = $region92
        $region91: #{tpu_custom_call.1} parent=75 // pred_region
          %624 = dma.done %s617, 16
        $region92: #{tpu_custom_call.1} parent=75 // pred_fallthru
          _
        %s625 = sand.u32 %s28, 1
        %s626 = scalar_lea.sflag [#allocation5], %s625
        %s627 = sand.u32 %s386, 1
        %s628 = scalar_lea.vmem [#allocation11], %s627
        // Predicated region
        $region93: #{tpu_custom_call.1} parent=75 // pred_check
          %p629 = pneg %p399
        $region94: #{tpu_custom_call.1} parent=75 // pred_check_branch
          %631 = sbr.rel (%p629) target = $region96
        $region95: #{tpu_custom_call.1} parent=75 // pred_region
          %633 = dma.done %s626, 16
        $region96: #{tpu_custom_call.1} parent=75 // pred_fallthru
          _
        %p634 = pneg %p61
        %p635 = pneg %p58
        %p636 = pneg %p87
        %p637 = pneg %p84
        %p638 = scmp.lt.s32.totalorder %s33, 1
        %s639 = scalar_select %p638, %s33, 1
        %s640 = smul.addr %s639, 4
        %s641 = smul.addr %s640, 8
        %s642 = scalar_lea.vmem %s2, %s641
        %p643 = pneg %p113
        %p644 = pneg %p110
        %p645 = scmp.lt.s32.totalorder %s33, 1
        %s646 = scalar_select %p645, %s33, 1
        %s647 = scalar_lea.vmem %s3, %s646
        %p648 = pneg %p139
        %p649 = pneg %p136
        %p650 = scmp.lt.s32.totalorder %s33, 1
        %s651 = scalar_select %p650, %s33, 1
        %s652 = smul.addr %s651, 4
        %s653 = smul.addr %s652, 8
        %s654 = scalar_lea.vmem %s4, %s653
        %p655 = pneg %p165
        %p656 = pneg %p162
        %s657 = sand.u32 %s28, 1
        %s658 = scalar_lea.sflag [#allocation5], %s657
        %s659 = sand.u32 %s178, 1
        %s660 = scalar_lea.vmem [#allocation9], %s659
        %p661 = pneg %p191
        %p662 = pneg %p188
        %p663 = scmp.lt.s32.totalorder %s33, 1
        %s664 = scalar_select %p663, %s33, 1
        %s665 = scalar_lea.vmem %s6, %s664
        %p666 = pneg %p217
        %p667 = pneg %p214
        %s668 = sand.u32 %s28, 1
        %s669 = scalar_lea.sflag [#allocation5], %s668
        %s670 = sand.u32 %s230, 1
        %s671 = scalar_lea.vmem [#allocation10], %s670
        %p672 = pneg %p243
        %p673 = pneg %p240
        %p674 = scmp.lt.s32.totalorder %s33, 1
        %s675 = scalar_select %p674, %s33, 1
        %s676 = smul.addr %s675, 4
        %s677 = smul.addr %s676, 8
        %s678 = scalar_lea.vmem %s8, %s677
        %p679 = pneg %p269
        %p680 = pneg %p266
        %p681 = scmp.lt.s32.totalorder %s33, 1
        %s682 = scalar_select %p681, %s33, 1
        %s683 = scalar_lea.vmem %s9, %s682
        %p684 = pneg %p295
        %p685 = pneg %p292
        %p686 = scmp.lt.s32.totalorder %s33, 1
        %s687 = scalar_select %p686, %s33, 1
        %s688 = smul.addr %s687, 8
        %s689 = smul.addr %s688, 8
        %s690 = scalar_lea.vmem %s10, %s689
        %p691 = pneg %p321
        %p692 = pneg %p318
        %p693 = scmp.lt.s32.totalorder %s33, 1
        %s694 = scalar_select %p693, %s33, 1
        %s695 = scalar_lea.vmem %s11, %s694
        %p696 = pneg %p347
        %p697 = pneg %p344
        %p698 = scmp.lt.s32.totalorder %s33, 1
        %s699 = scalar_select %p698, %s33, 1
        %s700 = scalar_lea.vmem %s12, %s699
        %p701 = pneg %p373
        %p702 = pneg %p370
        %s703 = sand.u32 %s28, 1
        %s704 = scalar_lea.sflag [#allocation5], %s703
        %s705 = sand.u32 %s386, 1
        %s706 = scalar_lea.vmem [#allocation11], %s705
        %p707 = pneg %p399
        %p708 = pneg %p396
        %p709 = pneg %p425
        %p710 = pneg %p422
        %p711 = scmp.lt.s32.totalorder %s33, 1
        %s712 = scalar_select %p711, %s33, 1
        %s713 = smul.addr %s712, 4
        %s714 = smul.addr %s713, 8
        %s715 = scalar_lea.vmem %s2, %s714
        %p716 = scmp.lt.s32.totalorder %s33, 1
        %s717 = scalar_select %p716, %s33, 1
        %s718 = scalar_lea.vmem %s3, %s717
        %p719 = scmp.lt.s32.totalorder %s33, 1
        %s720 = scalar_select %p719, %s33, 1
        %s721 = smul.addr %s720, 4
        %s722 = smul.addr %s721, 8
        %s723 = scalar_lea.vmem %s4, %s722
        %p724 = scmp.lt.s32.totalorder %s33, 1
        %s725 = scalar_select %p724, %s33, 1
        %s726 = scalar_lea.vmem %s6, %s725
        %p727 = scmp.lt.s32.totalorder %s33, 1
        %s728 = scalar_select %p727, %s33, 1
        %s729 = smul.addr %s728, 4
        %s730 = smul.addr %s729, 8
        %s731 = scalar_lea.vmem %s8, %s730
        %p732 = scmp.lt.s32.totalorder %s33, 1
        %s733 = scalar_select %p732, %s33, 1
        %s734 = scalar_lea.vmem %s9, %s733
        %p735 = scmp.lt.s32.totalorder %s33, 1
        %s736 = scalar_select %p735, %s33, 1
        %s737 = smul.addr %s736, 8
        %s738 = smul.addr %s737, 8
        %s739 = scalar_lea.vmem %s10, %s738
        %p740 = scmp.lt.s32.totalorder %s33, 1
        %s741 = scalar_select %p740, %s33, 1
        %s742 = scalar_lea.vmem %s11, %s741
        %p743 = scmp.lt.s32.totalorder %s33, 1
        %s744 = scalar_select %p743, %s33, 1
        %s745 = scalar_lea.vmem %s12, %s744
        %p746 = scmp.eq.s32.totalorder %s33, 0
        // Predicated region
        $region97: #{tpu_custom_call.1} parent=75 // pred_check
          %p747 = pneg %p746
        $region98: #{tpu_custom_call.1} parent=75 // pred_check_branch
          %749 = sbr.rel (%p747) target = $region100
        $region99: #{tpu_custom_call.1} parent=75 // pred_region
          %v750 = vld [vmem:[#allocation4] sm:$0xff]
          %v751 = vld [vmem:[#allocation4 + $0x8] sm:$0xff]
          %vm752 = vcmask 261120
          %753 = vst.msk [vmem:[#allocation2] sm:$0xff] %vm752, %v750
          %754 = vst.msk [vmem:[#allocation2 + $0x8] sm:$0xff] %vm752, %v751
        $region100: #{tpu_custom_call.1} parent=75 // pred_fallthru
          _
        %v755 = vld [vmem:[#allocation2] sm:$0xff]
        %v756 = vld [vmem:[#allocation2 + $0x8] sm:$0xff]
        %v757 = vld [vmem:[#allocation7] sm:$0x1]
        %v758 = vld [vmem:[#allocation7 + $0x1] sm:$0x1]
        %vm759 = vcmp.gt.f32.partialorder %v757, 0.5
        %vm760 = vcmp.gt.f32.partialorder %v758, 0.5
        %v761 = vld [vmem:[%s715] sm:$0xff]
        %v762 = vld [vmem:[%s715 + $0x8] sm:$0xff]
        %v763 = vld [vmem:[%s715 + $0x10] sm:$0xff]
        %v764 = vld [vmem:[%s715 + $0x18] sm:$0xff]
        %v765 = vld [vmem:[%s718] sm:$0x1]
        %v767 = vperm.slane %v765, 0
        %vm769 = vcmask 261120
        %v771 = vsel %vm769, %v755, 0
        %v774 = vsel %vm769, %v756, 0
        %776 = vmatpush.msra.mxu0 0.0
        %777 = vmatpush.msra.mxu0 0.0
        %778 = vmatpush.msra.mxu0 0.0
        %779 = vmatpush.msra.mxu0 0.0
        %780 = vmatpush.msra.mxu0 0.0
        %781 = vmatpush.msra.mxu0 0.0
        %782 = vmatpush.msra.mxu0 0.0
        %783 = vmatpush.msra.mxu0 0.0
        %784 = vmatpush.msra.mxu0 0.0
        %785 = vmatpush.msra.mxu0 0.0
        %786 = vmatpush.msra.mxu0 0.0
        %787 = vmatpush.msra.mxu0 0.0
        %788 = vmatpush.msra.mxu0 %v764
        %789 = vmatpush.msra.mxu0 %v763
        %790 = vmatpush.msra.mxu0 %v762
        %791 = vmatpush.msra.mxu0 %v761
        %792 = vmatmul.f32.gmra.mxu0 %v771
        %v793 = vpop.f32.mrf.mxu0
        %v794 = vadd.f32 %v767, %v793
        %795 = vmatmul.f32.gmra.mxu0 %v774
        %v796 = vpop.f32.mrf.mxu0
        %v797 = vadd.f32 %v767, %v796
        %798 = vdwg.mxu0
        %801 = vrot.lane.b32.xlu0 %v794, 120
        %v802 = vpop.permute.xlu0 %801
        %803 = vrot.lane.b32.xlu0 %v797, 120
        %v804 = vpop.permute.xlu0 %803
        %805 = vrot.lane.b32.xlu0 %v794, 112
        %v806 = vpop.permute.xlu0 %805
        %807 = vrot.lane.b32.xlu0 %v797, 112
        %v808 = vpop.permute.xlu0 %807
        %809 = vrot.lane.b32.xlu0 %v794, 104
        %v810 = vpop.permute.xlu0 %809
        %811 = vrot.lane.b32.xlu0 %v797, 104
        %v812 = vpop.permute.xlu0 %811
        %813 = vrot.lane.b32.xlu0 %v794, 96
        %v814 = vpop.permute.xlu0 %813
        %vm815 = vcmask 64512
        %v816 = vsel %vm815, %v794, 0
        %v818 = vsel %vm815, %v814, 0
        %820 = vmatpush.xpose.msra.mxu0 0.0
        %821 = vmatpush.xpose.msra.mxu0 0.0
        %822 = vmatpush.xpose.msra.mxu0 0.0
        %823 = vmatpush.xpose.msra.mxu0 0.0
        %824 = vmatpush.xpose.msra.mxu0 0.0
        %825 = vmatpush.xpose.msra.mxu0 0.0
        %826 = vmatpush.xpose.msra.mxu0 0.0
        %827 = vmatpush.xpose.msra.mxu0 0.0
        %828 = vmatpush.xpose.msra.mxu0 0.0
        %829 = vmatpush.xpose.msra.mxu0 0.0
        %830 = vmatpush.xpose.msra.mxu0 0.0
        %831 = vmatpush.xpose.msra.mxu0 0.0
        %832 = vmatpush.xpose.msra.mxu0 0.0
        %833 = vmatpush.xpose.msra.mxu0 0.0
        %834 = vmatpush.xpose.msra.mxu0 0.0
        %835 = vmatpush.xpose.msra.mxu0 %v818
        %836 = vmatmul.f32.gmra.mxu0 %v816
        %v837 = vpop.f32.mrf.mxu0
        %v838 = vadd.f32 0.0, %v837
        %839 = vdwg.mxu0
        %840 = vrot.lane.b32.xlu0 %v802, 96
        %v841 = vpop.permute.xlu0 %840
        %v842 = vsel %vm815, %v802, 0
        %v844 = vsel %vm815, %v841, 0
        %846 = vmatpush.xpose.msra.mxu0 0.0
        %847 = vmatpush.xpose.msra.mxu0 0.0
        %848 = vmatpush.xpose.msra.mxu0 0.0
        %849 = vmatpush.xpose.msra.mxu0 0.0
        %850 = vmatpush.xpose.msra.mxu0 0.0
        %851 = vmatpush.xpose.msra.mxu0 0.0
        %852 = vmatpush.xpose.msra.mxu0 0.0
        %853 = vmatpush.xpose.msra.mxu0 0.0
        %854 = vmatpush.xpose.msra.mxu0 0.0
        %855 = vmatpush.xpose.msra.mxu0 0.0
        %856 = vmatpush.xpose.msra.mxu0 0.0
        %857 = vmatpush.xpose.msra.mxu0 0.0
        %858 = vmatpush.xpose.msra.mxu0 0.0
        %859 = vmatpush.xpose.msra.mxu0 0.0
        %860 = vmatpush.xpose.msra.mxu0 0.0
        %861 = vmatpush.xpose.msra.mxu0 %v844
        %862 = vmatmul.f32.gmra.mxu0 %v842
        %v863 = vpop.f32.mrf.mxu0
        %v864 = vadd.f32 0.0, %v863
        %865 = vdwg.mxu0
        %866 = vrot.lane.b32.xlu0 %v806, 96
        %v867 = vpop.permute.xlu0 %866
        %v868 = vsel %vm815, %v806, 0
        %v870 = vsel %vm815, %v867, 0
        %872 = vmatpush.xpose.msra.mxu0 0.0
        %873 = vmatpush.xpose.msra.mxu0 0.0
        %874 = vmatpush.xpose.msra.mxu0 0.0
        %875 = vmatpush.xpose.msra.mxu0 0.0
        %876 = vmatpush.xpose.msra.mxu0 0.0
        %877 = vmatpush.xpose.msra.mxu0 0.0
        %878 = vmatpush.xpose.msra.mxu0 0.0
        %879 = vmatpush.xpose.msra.mxu0 0.0
        %880 = vmatpush.xpose.msra.mxu0 0.0
        %881 = vmatpush.xpose.msra.mxu0 0.0
        %882 = vmatpush.xpose.msra.mxu0 0.0
        %883 = vmatpush.xpose.msra.mxu0 0.0
        %884 = vmatpush.xpose.msra.mxu0 0.0
        %885 = vmatpush.xpose.msra.mxu0 0.0
        %886 = vmatpush.xpose.msra.mxu0 0.0
        %887 = vmatpush.xpose.msra.mxu0 %v870
        %888 = vmatmul.f32.gmra.mxu0 %v868
        %v889 = vpop.f32.mrf.mxu0
        %v890 = vadd.f32 0.0, %v889
        %891 = vdwg.mxu0
        %892 = vrot.lane.b32.xlu0 %v810, 96
        %v893 = vpop.permute.xlu0 %892
        %v894 = vsel %vm815, %v810, 0
        %v896 = vsel %vm815, %v893, 0
        %898 = vmatpush.xpose.msra.mxu0 0.0
        %899 = vmatpush.xpose.msra.mxu0 0.0
        %900 = vmatpush.xpose.msra.mxu0 0.0
        %901 = vmatpush.xpose.msra.mxu0 0.0
        %902 = vmatpush.xpose.msra.mxu0 0.0
        %903 = vmatpush.xpose.msra.mxu0 0.0
        %904 = vmatpush.xpose.msra.mxu0 0.0
        %905 = vmatpush.xpose.msra.mxu0 0.0
        %906 = vmatpush.xpose.msra.mxu0 0.0
        %907 = vmatpush.xpose.msra.mxu0 0.0
        %908 = vmatpush.xpose.msra.mxu0 0.0
        %909 = vmatpush.xpose.msra.mxu0 0.0
        %910 = vmatpush.xpose.msra.mxu0 0.0
        %911 = vmatpush.xpose.msra.mxu0 0.0
        %912 = vmatpush.xpose.msra.mxu0 0.0
        %913 = vmatpush.xpose.msra.mxu0 %v896
        %914 = vmatmul.f32.gmra.mxu0 %v894
        %v915 = vpop.f32.mrf.mxu0
        %v916 = vadd.f32 0.0, %v915
        %917 = vdwg.mxu0
        %918 = vrot.lane.b32.xlu0 %v797, 96
        %v919 = vpop.permute.xlu0 %918
        %v920 = vsel %vm815, %v797, 0
        %v922 = vsel %vm815, %v919, 0
        %924 = vmatpush.xpose.msra.mxu0 0.0
        %925 = vmatpush.xpose.msra.mxu0 0.0
        %926 = vmatpush.xpose.msra.mxu0 0.0
        %927 = vmatpush.xpose.msra.mxu0 0.0
        %928 = vmatpush.xpose.msra.mxu0 0.0
        %929 = vmatpush.xpose.msra.mxu0 0.0
        %930 = vmatpush.xpose.msra.mxu0 0.0
        %931 = vmatpush.xpose.msra.mxu0 0.0
        %932 = vmatpush.xpose.msra.mxu0 0.0
        %933 = vmatpush.xpose.msra.mxu0 0.0
        %934 = vmatpush.xpose.msra.mxu0 0.0
        %935 = vmatpush.xpose.msra.mxu0 0.0
        %936 = vmatpush.xpose.msra.mxu0 0.0
        %937 = vmatpush.xpose.msra.mxu0 0.0
        %938 = vmatpush.xpose.msra.mxu0 0.0
        %939 = vmatpush.xpose.msra.mxu0 %v922
        %940 = vmatmul.f32.gmra.mxu0 %v920
        %v941 = vpop.f32.mrf.mxu0
        %v942 = vadd.f32 0.0, %v941
        %943 = vdwg.mxu0
        %944 = vrot.lane.b32.xlu0 %v804, 96
        %v945 = vpop.permute.xlu0 %944
        %v946 = vsel %vm815, %v804, 0
        %v948 = vsel %vm815, %v945, 0
        %950 = vmatpush.xpose.msra.mxu0 0.0
        %951 = vmatpush.xpose.msra.mxu0 0.0
        %952 = vmatpush.xpose.msra.mxu0 0.0
        %953 = vmatpush.xpose.msra.mxu0 0.0
        %954 = vmatpush.xpose.msra.mxu0 0.0
        %955 = vmatpush.xpose.msra.mxu0 0.0
        %956 = vmatpush.xpose.msra.mxu0 0.0
        %957 = vmatpush.xpose.msra.mxu0 0.0
        %958 = vmatpush.xpose.msra.mxu0 0.0
        %959 = vmatpush.xpose.msra.mxu0 0.0
        %960 = vmatpush.xpose.msra.mxu0 0.0
        %961 = vmatpush.xpose.msra.mxu0 0.0
        %962 = vmatpush.xpose.msra.mxu0 0.0
        %963 = vmatpush.xpose.msra.mxu0 0.0
        %964 = vmatpush.xpose.msra.mxu0 0.0
        %965 = vmatpush.xpose.msra.mxu0 %v948
        %966 = vmatmul.f32.gmra.mxu0 %v946
        %v967 = vpop.f32.mrf.mxu0
        %v968 = vadd.f32 0.0, %v967
        %969 = vdwg.mxu0
        %970 = vrot.lane.b32.xlu0 %v808, 96
        %v971 = vpop.permute.xlu0 %970
        %v972 = vsel %vm815, %v808, 0
        %v974 = vsel %vm815, %v971, 0
        %976 = vmatpush.xpose.msra.mxu0 0.0
        %977 = vmatpush.xpose.msra.mxu0 0.0
        %978 = vmatpush.xpose.msra.mxu0 0.0
        %979 = vmatpush.xpose.msra.mxu0 0.0
        %980 = vmatpush.xpose.msra.mxu0 0.0
        %981 = vmatpush.xpose.msra.mxu0 0.0
        %982 = vmatpush.xpose.msra.mxu0 0.0
        %983 = vmatpush.xpose.msra.mxu0 0.0
        %984 = vmatpush.xpose.msra.mxu0 0.0
        %985 = vmatpush.xpose.msra.mxu0 0.0
        %986 = vmatpush.xpose.msra.mxu0 0.0
        %987 = vmatpush.xpose.msra.mxu0 0.0
        %988 = vmatpush.xpose.msra.mxu0 0.0
        %989 = vmatpush.xpose.msra.mxu0 0.0
        %990 = vmatpush.xpose.msra.mxu0 0.0
        %991 = vmatpush.xpose.msra.mxu0 %v974
        %992 = vmatmul.f32.gmra.mxu0 %v972
        %v993 = vpop.f32.mrf.mxu0
        %v994 = vadd.f32 0.0, %v993
        %995 = vdwg.mxu0
        %996 = vrot.lane.b32.xlu0 %v812, 96
        %v997 = vpop.permute.xlu0 %996
        %v998 = vsel %vm815, %v812, 0
        %v1000 = vsel %vm815, %v997, 0
        %1002 = vmatpush.xpose.msra.mxu0 0.0
        %1003 = vmatpush.xpose.msra.mxu0 0.0
        %1004 = vmatpush.xpose.msra.mxu0 0.0
        %1005 = vmatpush.xpose.msra.mxu0 0.0
        %1006 = vmatpush.xpose.msra.mxu0 0.0
        %1007 = vmatpush.xpose.msra.mxu0 0.0
        %1008 = vmatpush.xpose.msra.mxu0 0.0
        %1009 = vmatpush.xpose.msra.mxu0 0.0
        %1010 = vmatpush.xpose.msra.mxu0 0.0
        %1011 = vmatpush.xpose.msra.mxu0 0.0
        %1012 = vmatpush.xpose.msra.mxu0 0.0
        %1013 = vmatpush.xpose.msra.mxu0 0.0
        %1014 = vmatpush.xpose.msra.mxu0 0.0
        %1015 = vmatpush.xpose.msra.mxu0 0.0
        %1016 = vmatpush.xpose.msra.mxu0 0.0
        %1017 = vmatpush.xpose.msra.mxu0 %v1000
        %1018 = vmatmul.f32.gmra.mxu0 %v998
        %v1019 = vpop.f32.mrf.mxu0
        %v1020 = vadd.f32 0.0, %v1019
        %1021 = vdwg.mxu0
        %v1022 = vsel %vm759, 1, 0
        %v1023 = vsel %vm760, 1, 0
        %v1024 = vperm.slane %v1022, 0
        %v1025 = vperm.slane %v1023, 0
        %vm1026 = vcmp.eq.s32.totalorder %v1024, 1
        %vm1027 = vcmp.eq.s32.totalorder %v1025, 1
        %v1028 = vsel %vm1026, %v838, -1e+09
        %v1029 = vsel %vm1026, %v864, -1e+09
        %v1030 = vsel %vm1026, %v890, -1e+09
        %v1031 = vsel %vm1026, %v916, -1e+09
        %v1032 = vsel %vm1027, %v942, -1e+09
        %v1033 = vsel %vm1027, %v968, -1e+09
        %v1034 = vsel %vm1027, %v994, -1e+09
        %v1035 = vsel %vm1027, %v1020, -1e+09
        %v1036 = vsel %vm815, %v1028, -inf
        %1037 = vmax.xlane.f32.xlu0 %v1036
        %v1038 = vpop.xlane.xlu0 %1037
        %v1039 = vsel %vm815, %v1029, -inf
        %1040 = vmax.xlane.f32.xlu0 %v1039
        %v1041 = vpop.xlane.xlu0 %1040
        %v1042 = vsel %vm815, %v1030, -inf
        %1043 = vmax.xlane.f32.xlu0 %v1042
        %v1044 = vpop.xlane.xlu0 %1043
        %v1045 = vsel %vm815, %v1031, -inf
        %1046 = vmax.xlane.f32.xlu0 %v1045
        %v1047 = vpop.xlane.xlu0 %1046
        %v1048 = vsel %vm815, %v1032, -inf
        %1049 = vmax.xlane.f32.xlu0 %v1048
        %v1050 = vpop.xlane.xlu0 %1049
        %v1051 = vsel %vm815, %v1033, -inf
        %1052 = vmax.xlane.f32.xlu0 %v1051
        %v1053 = vpop.xlane.xlu0 %1052
        %v1054 = vsel %vm815, %v1034, -inf
        %1055 = vmax.xlane.f32.xlu0 %v1054
        %v1056 = vpop.xlane.xlu0 %1055
        %v1057 = vsel %vm815, %v1035, -inf
        %1058 = vmax.xlane.f32.xlu0 %v1057
        %v1059 = vpop.xlane.xlu0 %1058
        %v1060 = vsub.f32 %v1028, %v1038
        %v1061 = vsub.f32 %v1029, %v1041
        %v1062 = vsub.f32 %v1030, %v1044
        %v1063 = vsub.f32 %v1031, %v1047
        %v1064 = vsub.f32 %v1032, %v1050
        %v1065 = vsub.f32 %v1033, %v1053
        %v1066 = vsub.f32 %v1034, %v1056
        %v1067 = vsub.f32 %v1035, %v1059
        %v1068 = vmul.f32 %v1060, 1.442695
        %v1069 = vpow.pop %v1068
        %v1070 = vmul.f32 %v1061, 1.442695
        %v1071 = vpow.pop %v1070
        %v1072 = vmul.f32 %v1062, 1.442695
        %v1073 = vpow.pop %v1072
        %v1074 = vmul.f32 %v1063, 1.442695
        %v1075 = vpow.pop %v1074
        %v1076 = vmul.f32 %v1064, 1.442695
        %v1077 = vpow.pop %v1076
        %v1078 = vmul.f32 %v1065, 1.442695
        %v1079 = vpow.pop %v1078
        %v1080 = vmul.f32 %v1066, 1.442695
        %v1081 = vpow.pop %v1080
        %v1082 = vmul.f32 %v1067, 1.442695
        %v1083 = vpow.pop %v1082
        %v1084 = vsel %vm815, %v1069, 0.0
        %1085 = vadd.xlane.f32.xlu0 %v1084
        %v1086 = vpop.xlane.xlu0 %1085
        %v1087 = vsel %vm815, %v1071, 0.0
        %1088 = vadd.xlane.f32.xlu0 %v1087
        %v1089 = vpop.xlane.xlu0 %1088
        %v1090 = vsel %vm815, %v1073, 0.0
        %1091 = vadd.xlane.f32.xlu0 %v1090
        %v1092 = vpop.xlane.xlu0 %1091
        %v1093 = vsel %vm815, %v1075, 0.0
        %1094 = vadd.xlane.f32.xlu0 %v1093
        %v1095 = vpop.xlane.xlu0 %1094
        %v1096 = vsel %vm815, %v1077, 0.0
        %1097 = vadd.xlane.f32.xlu0 %v1096
        %v1098 = vpop.xlane.xlu0 %1097
        %v1099 = vsel %vm815, %v1079, 0.0
        %1100 = vadd.xlane.f32.xlu0 %v1099
        %v1101 = vpop.xlane.xlu0 %1100
        %v1102 = vsel %vm815, %v1081, 0.0
        %1103 = vadd.xlane.f32.xlu0 %v1102
        %v1104 = vpop.xlane.xlu0 %1103
        %v1105 = vsel %vm815, %v1083, 0.0
        %1106 = vadd.xlane.f32.xlu0 %v1105
        %v1107 = vpop.xlane.xlu0 %1106
        %v1108 = vrcp.pop %v1086
        %v1109 = vrcp.pop %v1089
        %v1110 = vrcp.pop %v1092
        %v1111 = vrcp.pop %v1095
        %v1112 = vrcp.pop %v1098
        %v1113 = vrcp.pop %v1101
        %v1114 = vrcp.pop %v1104
        %v1115 = vrcp.pop %v1107
        %v1116 = vmul.f32 %v1069, %v1108
        %v1117 = vmul.f32 %v1071, %v1109
        %v1118 = vmul.f32 %v1073, %v1110
        %v1119 = vmul.f32 %v1075, %v1111
        %v1120 = vmul.f32 %v1077, %v1112
        %v1121 = vmul.f32 %v1079, %v1113
        %v1122 = vmul.f32 %v1081, %v1114
        %v1123 = vmul.f32 %v1083, %v1115
        %1124 = vrot.lane.b32.xlu0 %v794, 64
        %v1125 = vpop.permute.xlu0 %1124
        %v1128 = vsel %vm815, %v1116, 0
        %1130 = vmatpush.msra.mxu0 0.0
        %1131 = vmatpush.msra.mxu0 0.0
        %1132 = vmatpush.msra.mxu0 0.0
        %1133 = vmatpush.msra.mxu0 0.0
        %1134 = vmatpush.msra.mxu0 0.0
        %1135 = vmatpush.msra.mxu0 0.0
        %1136 = vmatpush.msra.mxu0 0.0
        %1137 = vmatpush.msra.mxu0 0.0
        %1138 = vmatpush.msra.mxu0 0.0
        %1139 = vmatpush.msra.mxu0 0.0
        %1140 = vmatpush.msra.mxu0 0.0
        %1141 = vmatpush.msra.mxu0 0.0
        %1142 = vmatpush.msra.mxu0 0.0
        %1143 = vmatpush.msra.mxu0 0.0
        %1144 = vmatpush.msra.mxu0 0.0
        %1145 = vmatpush.msra.mxu0 %v1125
        %1146 = vmatmul.f32.gmra.mxu0 %v1128
        %v1147 = vpop.f32.mrf.mxu0
        %v1148 = vadd.f32 0.0, %v1147
        %1149 = vdwg.mxu0
        %1150 = vrot.lane.b32.xlu0 %v802, 64
        %v1151 = vpop.permute.xlu0 %1150
        %v1154 = vsel %vm815, %v1117, 0
        %1156 = vmatpush.msra.mxu0 0.0
        %1157 = vmatpush.msra.mxu0 0.0
        %1158 = vmatpush.msra.mxu0 0.0
        %1159 = vmatpush.msra.mxu0 0.0
        %1160 = vmatpush.msra.mxu0 0.0
        %1161 = vmatpush.msra.mxu0 0.0
        %1162 = vmatpush.msra.mxu0 0.0
        %1163 = vmatpush.msra.mxu0 0.0
        %1164 = vmatpush.msra.mxu0 0.0
        %1165 = vmatpush.msra.mxu0 0.0
        %1166 = vmatpush.msra.mxu0 0.0
        %1167 = vmatpush.msra.mxu0 0.0
        %1168 = vmatpush.msra.mxu0 0.0
        %1169 = vmatpush.msra.mxu0 0.0
        %1170 = vmatpush.msra.mxu0 0.0
        %1171 = vmatpush.msra.mxu0 %v1151
        %1172 = vmatmul.f32.gmra.mxu0 %v1154
        %v1173 = vpop.f32.mrf.mxu0
        %v1174 = vadd.f32 0.0, %v1173
        %1175 = vdwg.mxu0
        %1176 = vrot.lane.b32.xlu0 %v806, 64
        %v1177 = vpop.permute.xlu0 %1176
        %v1180 = vsel %vm815, %v1118, 0
        %1182 = vmatpush.msra.mxu0 0.0
        %1183 = vmatpush.msra.mxu0 0.0
        %1184 = vmatpush.msra.mxu0 0.0
        %1185 = vmatpush.msra.mxu0 0.0
        %1186 = vmatpush.msra.mxu0 0.0
        %1187 = vmatpush.msra.mxu0 0.0
        %1188 = vmatpush.msra.mxu0 0.0
        %1189 = vmatpush.msra.mxu0 0.0
        %1190 = vmatpush.msra.mxu0 0.0
        %1191 = vmatpush.msra.mxu0 0.0
        %1192 = vmatpush.msra.mxu0 0.0
        %1193 = vmatpush.msra.mxu0 0.0
        %1194 = vmatpush.msra.mxu0 0.0
        %1195 = vmatpush.msra.mxu0 0.0
        %1196 = vmatpush.msra.mxu0 0.0
        %1197 = vmatpush.msra.mxu0 %v1177
        %1198 = vmatmul.f32.gmra.mxu0 %v1180
        %v1199 = vpop.f32.mrf.mxu0
        %v1200 = vadd.f32 0.0, %v1199
        %1201 = vdwg.mxu0
        %1202 = vrot.lane.b32.xlu0 %v810, 64
        %v1203 = vpop.permute.xlu0 %1202
        %v1206 = vsel %vm815, %v1119, 0
        %1208 = vmatpush.msra.mxu0 0.0
        %1209 = vmatpush.msra.mxu0 0.0
        %1210 = vmatpush.msra.mxu0 0.0
        %1211 = vmatpush.msra.mxu0 0.0
        %1212 = vmatpush.msra.mxu0 0.0
        %1213 = vmatpush.msra.mxu0 0.0
        %1214 = vmatpush.msra.mxu0 0.0
        %1215 = vmatpush.msra.mxu0 0.0
        %1216 = vmatpush.msra.mxu0 0.0
        %1217 = vmatpush.msra.mxu0 0.0
        %1218 = vmatpush.msra.mxu0 0.0
        %1219 = vmatpush.msra.mxu0 0.0
        %1220 = vmatpush.msra.mxu0 0.0
        %1221 = vmatpush.msra.mxu0 0.0
        %1222 = vmatpush.msra.mxu0 0.0
        %1223 = vmatpush.msra.mxu0 %v1203
        %1224 = vmatmul.f32.gmra.mxu0 %v1206
        %v1225 = vpop.f32.mrf.mxu0
        %v1226 = vadd.f32 0.0, %v1225
        %1227 = vdwg.mxu0
        %1228 = vrot.lane.b32.xlu0 %v797, 64
        %v1229 = vpop.permute.xlu0 %1228
        %v1232 = vsel %vm815, %v1120, 0
        %1234 = vmatpush.msra.mxu0 0.0
        %1235 = vmatpush.msra.mxu0 0.0
        %1236 = vmatpush.msra.mxu0 0.0
        %1237 = vmatpush.msra.mxu0 0.0
        %1238 = vmatpush.msra.mxu0 0.0
        %1239 = vmatpush.msra.mxu0 0.0
        %1240 = vmatpush.msra.mxu0 0.0
        %1241 = vmatpush.msra.mxu0 0.0
        %1242 = vmatpush.msra.mxu0 0.0
        %1243 = vmatpush.msra.mxu0 0.0
        %1244 = vmatpush.msra.mxu0 0.0
        %1245 = vmatpush.msra.mxu0 0.0
        %1246 = vmatpush.msra.mxu0 0.0
        %1247 = vmatpush.msra.mxu0 0.0
        %1248 = vmatpush.msra.mxu0 0.0
        %1249 = vmatpush.msra.mxu0 %v1229
        %1250 = vmatmul.f32.gmra.mxu0 %v1232
        %v1251 = vpop.f32.mrf.mxu0
        %v1252 = vadd.f32 0.0, %v1251
        %1253 = vdwg.mxu0
        %1254 = vrot.lane.b32.xlu0 %v804, 64
        %v1255 = vpop.permute.xlu0 %1254
        %v1258 = vsel %vm815, %v1121, 0
        %1260 = vmatpush.msra.mxu0 0.0
        %1261 = vmatpush.msra.mxu0 0.0
        %1262 = vmatpush.msra.mxu0 0.0
        %1263 = vmatpush.msra.mxu0 0.0
        %1264 = vmatpush.msra.mxu0 0.0
        %1265 = vmatpush.msra.mxu0 0.0
        %1266 = vmatpush.msra.mxu0 0.0
        %1267 = vmatpush.msra.mxu0 0.0
        %1268 = vmatpush.msra.mxu0 0.0
        %1269 = vmatpush.msra.mxu0 0.0
        %1270 = vmatpush.msra.mxu0 0.0
        %1271 = vmatpush.msra.mxu0 0.0
        %1272 = vmatpush.msra.mxu0 0.0
        %1273 = vmatpush.msra.mxu0 0.0
        %1274 = vmatpush.msra.mxu0 0.0
        %1275 = vmatpush.msra.mxu0 %v1255
        %1276 = vmatmul.f32.gmra.mxu0 %v1258
        %v1277 = vpop.f32.mrf.mxu0
        %v1278 = vadd.f32 0.0, %v1277
        %1279 = vdwg.mxu0
        %1280 = vrot.lane.b32.xlu0 %v808, 64
        %v1281 = vpop.permute.xlu0 %1280
        %v1284 = vsel %vm815, %v1122, 0
        %1286 = vmatpush.msra.mxu0 0.0
        %1287 = vmatpush.msra.mxu0 0.0
        %1288 = vmatpush.msra.mxu0 0.0
        %1289 = vmatpush.msra.mxu0 0.0
        %1290 = vmatpush.msra.mxu0 0.0
        %1291 = vmatpush.msra.mxu0 0.0
        %1292 = vmatpush.msra.mxu0 0.0
        %1293 = vmatpush.msra.mxu0 0.0
        %1294 = vmatpush.msra.mxu0 0.0
        %1295 = vmatpush.msra.mxu0 0.0
        %1296 = vmatpush.msra.mxu0 0.0
        %1297 = vmatpush.msra.mxu0 0.0
        %1298 = vmatpush.msra.mxu0 0.0
        %1299 = vmatpush.msra.mxu0 0.0
        %1300 = vmatpush.msra.mxu0 0.0
        %1301 = vmatpush.msra.mxu0 %v1281
        %1302 = vmatmul.f32.gmra.mxu0 %v1284
        %v1303 = vpop.f32.mrf.mxu0
        %v1304 = vadd.f32 0.0, %v1303
        %1305 = vdwg.mxu0
        %1306 = vrot.lane.b32.xlu0 %v812, 64
        %v1307 = vpop.permute.xlu0 %1306
        %v1310 = vsel %vm815, %v1123, 0
        %1312 = vmatpush.msra.mxu0 0.0
        %1313 = vmatpush.msra.mxu0 0.0
        %1314 = vmatpush.msra.mxu0 0.0
        %1315 = vmatpush.msra.mxu0 0.0
        %1316 = vmatpush.msra.mxu0 0.0
        %1317 = vmatpush.msra.mxu0 0.0
        %1318 = vmatpush.msra.mxu0 0.0
        %1319 = vmatpush.msra.mxu0 0.0
        %1320 = vmatpush.msra.mxu0 0.0
        %1321 = vmatpush.msra.mxu0 0.0
        %1322 = vmatpush.msra.mxu0 0.0
        %1323 = vmatpush.msra.mxu0 0.0
        %1324 = vmatpush.msra.mxu0 0.0
        %1325 = vmatpush.msra.mxu0 0.0
        %1326 = vmatpush.msra.mxu0 0.0
        %1327 = vmatpush.msra.mxu0 %v1307
        %1328 = vmatmul.f32.gmra.mxu0 %v1310
        %v1329 = vpop.f32.mrf.mxu0
        %v1330 = vadd.f32 0.0, %v1329
        %1331 = vdwg.mxu0
        %1332 = vst.msk [vmem:[#allocation3] sm:$0xff] %vm815, %v1148
        %1333 = vst.msk [vmem:[#allocation3 + $0x8] sm:$0xff] %vm815, %v1252
        %1336 = vrot.lane.b32.xlu0 %v1174, 8
        %v1337 = vpop.permute.xlu0 %1336
        %1338 = vrot.lane.b32.xlu0 %v1278, 8
        %v1339 = vpop.permute.xlu0 %1338
        %vm1342 = vcmask 130112
        %1343 = vst.msk [vmem:[#allocation3] sm:$0xff] %vm1342, %v1337
        %1344 = vst.msk [vmem:[#allocation3 + $0x8] sm:$0xff] %vm1342, %v1339
        %1347 = vrot.lane.b32.xlu0 %v1200, 16
        %v1348 = vpop.permute.xlu0 %1347
        %1349 = vrot.lane.b32.xlu0 %v1304, 16
        %v1350 = vpop.permute.xlu0 %1349
        %vm1353 = vcmask 195712
        %1354 = vst.msk [vmem:[#allocation3] sm:$0xff] %vm1353, %v1348
        %1355 = vst.msk [vmem:[#allocation3 + $0x8] sm:$0xff] %vm1353, %v1350
        %1358 = vrot.lane.b32.xlu0 %v1226, 24
        %v1359 = vpop.permute.xlu0 %1358
        %1360 = vrot.lane.b32.xlu0 %v1330, 24
        %v1361 = vpop.permute.xlu0 %1360
        %vm1364 = vcmask 261312
        %1365 = vst.msk [vmem:[#allocation3] sm:$0xff] %vm1364, %v1359
        %1366 = vst.msk [vmem:[#allocation3 + $0x8] sm:$0xff] %vm1364, %v1361
        %v1367 = vld [vmem:[#allocation3] sm:$0xff]
        %v1368 = vld [vmem:[#allocation3 + $0x8] sm:$0xff]
        %v1369 = vld [vmem:[%s723] sm:$0xff]
        %v1370 = vld [vmem:[%s723 + $0x8] sm:$0xff]
        %v1371 = vld [vmem:[%s723 + $0x10] sm:$0xff]
        %v1372 = vld [vmem:[%s723 + $0x18] sm:$0xff]
        %v1373 = vld [vmem:[%s610] sm:$0x1]
        %v1375 = vperm.slane %v1373, 0
        %v1378 = vsel %vm769, %v1367, 0
        %v1381 = vsel %vm769, %v1368, 0
        %1383 = vmatpush.msra.mxu0 0.0
        %1384 = vmatpush.msra.mxu0 0.0
        %1385 = vmatpush.msra.mxu0 0.0
        %1386 = vmatpush.msra.mxu0 0.0
        %1387 = vmatpush.msra.mxu0 0.0
        %1388 = vmatpush.msra.mxu0 0.0
        %1389 = vmatpush.msra.mxu0 0.0
        %1390 = vmatpush.msra.mxu0 0.0
        %1391 = vmatpush.msra.mxu0 0.0
        %1392 = vmatpush.msra.mxu0 0.0
        %1393 = vmatpush.msra.mxu0 0.0
        %1394 = vmatpush.msra.mxu0 0.0
        %1395 = vmatpush.msra.mxu0 %v1372
        %1396 = vmatpush.msra.mxu0 %v1371
        %1397 = vmatpush.msra.mxu0 %v1370
        %1398 = vmatpush.msra.mxu0 %v1369
        %1399 = vmatmul.f32.gmra.mxu0 %v1378
        %v1400 = vpop.f32.mrf.mxu0
        %v1401 = vadd.f32 %v1375, %v1400
        %1402 = vmatmul.f32.gmra.mxu0 %v1381
        %v1403 = vpop.f32.mrf.mxu0
        %v1404 = vadd.f32 %v1375, %v1403
        %1405 = vdwg.mxu0
        %v1406 = vadd.f32 %v1401, %v755
        %v1407 = vadd.f32 %v1404, %v756
        %v1408 = vld [vmem:[%s726] sm:$0x1]
        %v1409 = vld [vmem:[%s619] sm:$0x1]
        %v1410 = vsel %vm769, %v1406, 0.0
        %1411 = vadd.xlane.f32.xlu0 %v1410
        %v1412 = vpop.xlane.xlu0 %1411
        %v1413 = vsel %vm769, %v1407, 0.0
        %1414 = vadd.xlane.f32.xlu0 %v1413
        %v1415 = vpop.xlane.xlu0 %1414
        %v1416 = vrcp.pop 32.0
        %v1417 = vmul.f32 32.0, %v1416
        %v1418 = vsub.f32 1.0, %v1417
        %v1419 = vmul.f32 %v1416, %v1418
        %v1420 = vadd.f32 %v1416, %v1419
        %vm1421 = vweird.f32 %v1416
        %v1422 = vsel %vm1421, %v1416, %v1420
        %v1423 = vmul.f32 %v1412, %v1422
        %v1424 = vmul.f32 %v1415, %v1422
        %v1425 = vsub.f32 %v1406, %v1423
        %v1426 = vsub.f32 %v1407, %v1424
        %v1427 = vmul.f32 %v1425, %v1425
        %v1428 = vmul.f32 %v1426, %v1426
        %v1429 = vsel %vm769, %v1427, 0.0
        %1430 = vadd.xlane.f32.xlu0 %v1429
        %v1431 = vpop.xlane.xlu0 %1430
        %v1432 = vsel %vm769, %v1428, 0.0
        %1433 = vadd.xlane.f32.xlu0 %v1432
        %v1434 = vpop.xlane.xlu0 %1433
        %v1435 = vmul.f32 %v1431, %v1422
        %v1436 = vmul.f32 %v1434, %v1422
        %v1437 = vadd.f32 %v1435, 1e-05
        %v1438 = vadd.f32 %v1436, 1e-05
        %v1439 = vrsqrt.pop %v1437
        %v1440 = vmul.f32 %v1439, %v1437
        %v1441 = vmul.f32 %v1440, %v1439
        %v1442 = vmul.f32 0.5, %v1441
        %v1443 = vsub.f32 1.5, %v1442
        %v1444 = vmul.f32 %v1439, %v1443
        %vm1445 = vweird.f32 %v1437
        %vm1446 = vweird.f32 %v1439
        %vm1447 = vmor %vm1445, %vm1446
        %v1448 = vsel %vm1447, %v1439, %v1444
        %v1449 = vrsqrt.pop %v1438
        %v1450 = vmul.f32 %v1449, %v1438
        %v1451 = vmul.f32 %v1450, %v1449
        %v1452 = vmul.f32 0.5, %v1451
        %v1453 = vsub.f32 1.5, %v1452
        %v1454 = vmul.f32 %v1449, %v1453
        %vm1455 = vweird.f32 %v1438
        %vm1456 = vweird.f32 %v1449
        %vm1457 = vmor %vm1455, %vm1456
        %v1458 = vsel %vm1457, %v1449, %v1454
        %v1459 = vmul.f32 %v1425, %v1448
        %v1460 = vmul.f32 %v1426, %v1458
        %v1462 = vperm.slane %v1408, 0
        %v1464 = vmul.f32 %v1459, %v1462
        %v1465 = vmul.f32 %v1460, %v1462
        %v1467 = vperm.slane %v1409, 0
        %v1469 = vadd.f32 %v1464, %v1467
        %v1470 = vadd.f32 %v1465, %v1467
        %v1471 = vld [vmem:[%s731] sm:$0xff]
        %v1472 = vld [vmem:[%s731 + $0x8] sm:$0xff]
        %v1473 = vld [vmem:[%s731 + $0x10] sm:$0xff]
        %v1474 = vld [vmem:[%s731 + $0x18] sm:$0xff]
        %v1475 = vld [vmem:[%s734] sm:$0x1]
        %v1477 = vperm.slane %v1475, 0
        %v1480 = vsel %vm769, %v1469, 0
        %v1483 = vsel %vm769, %v1470, 0
        %1485 = vmatpush.msra.mxu0 0.0
        %1486 = vmatpush.msra.mxu0 0.0
        %1487 = vmatpush.msra.mxu0 0.0
        %1488 = vmatpush.msra.mxu0 0.0
        %1489 = vmatpush.msra.mxu0 0.0
        %1490 = vmatpush.msra.mxu0 0.0
        %1491 = vmatpush.msra.mxu0 0.0
        %1492 = vmatpush.msra.mxu0 0.0
        %1493 = vmatpush.msra.mxu0 0.0
        %1494 = vmatpush.msra.mxu0 0.0
        %1495 = vmatpush.msra.mxu0 0.0
        %1496 = vmatpush.msra.mxu0 0.0
        %1497 = vmatpush.msra.mxu0 %v1474
        %1498 = vmatpush.msra.mxu0 %v1473
        %1499 = vmatpush.msra.mxu0 %v1472
        %1500 = vmatpush.msra.mxu0 %v1471
        %1501 = vmatmul.f32.gmra.mxu0 %v1480
        %v1502 = vpop.f32.mrf.mxu0
        %v1503 = vadd.f32 %v1477, %v1502
        %1504 = vmatmul.f32.gmra.mxu0 %v1483
        %v1505 = vpop.f32.mrf.mxu0
        %v1506 = vadd.f32 %v1477, %v1505
        %1507 = vdwg.mxu0
        %v1508 = vmax.f32 %v1503, 0.0
        %v1509 = vmax.f32 %v1506, 0.0
        %v1510 = vld [vmem:[%s739] sm:$0xff]
        %v1511 = vld [vmem:[%s739 + $0x8] sm:$0xff]
        %v1512 = vld [vmem:[%s739 + $0x10] sm:$0xff]
        %v1513 = vld [vmem:[%s739 + $0x18] sm:$0xff]
        %v1514 = vld [vmem:[%s739 + $0x20] sm:$0xff]
        %v1515 = vld [vmem:[%s739 + $0x28] sm:$0xff]
        %v1516 = vld [vmem:[%s739 + $0x30] sm:$0xff]
        %v1517 = vld [vmem:[%s739 + $0x38] sm:$0xff]
        %v1518 = vld [vmem:[%s742] sm:$0x1]
        %v1520 = vperm.slane %v1518, 0
        %vm1522 = vcmask 523264
        %v1524 = vsel %vm1522, %v1508, 0
        %v1527 = vsel %vm1522, %v1509, 0
        %1529 = vmatpush.msra.mxu0 0.0
        %1530 = vmatpush.msra.mxu0 0.0
        %1531 = vmatpush.msra.mxu0 0.0
        %1532 = vmatpush.msra.mxu0 0.0
        %1533 = vmatpush.msra.mxu0 0.0
        %1534 = vmatpush.msra.mxu0 0.0
        %1535 = vmatpush.msra.mxu0 0.0
        %1536 = vmatpush.msra.mxu0 0.0
        %1537 = vmatpush.msra.mxu0 %v1517
        %1538 = vmatpush.msra.mxu0 %v1516
        %1539 = vmatpush.msra.mxu0 %v1515
        %1540 = vmatpush.msra.mxu0 %v1514
        %1541 = vmatpush.msra.mxu0 %v1513
        %1542 = vmatpush.msra.mxu0 %v1512
        %1543 = vmatpush.msra.mxu0 %v1511
        %1544 = vmatpush.msra.mxu0 %v1510
        %1545 = vmatmul.f32.gmra.mxu0 %v1524
        %v1546 = vpop.f32.mrf.mxu0
        %v1547 = vadd.f32 %v1520, %v1546
        %1548 = vmatmul.f32.gmra.mxu0 %v1527
        %v1549 = vpop.f32.mrf.mxu0
        %v1550 = vadd.f32 %v1520, %v1549
        %1551 = vdwg.mxu0
        %v1552 = vadd.f32 %v1547, %v1469
        %v1553 = vadd.f32 %v1550, %v1470
        %v1554 = vld [vmem:[%s745] sm:$0x1]
        %v1555 = vld [vmem:[%s628] sm:$0x1]
        %v1556 = vsel %vm769, %v1552, 0.0
        %1557 = vadd.xlane.f32.xlu0 %v1556
        %v1558 = vpop.xlane.xlu0 %1557
        %v1559 = vsel %vm769, %v1553, 0.0
        %1560 = vadd.xlane.f32.xlu0 %v1559
        %v1561 = vpop.xlane.xlu0 %1560
        %v1562 = vmul.f32 %v1558, %v1422
        %v1563 = vmul.f32 %v1561, %v1422
        %v1564 = vsub.f32 %v1552, %v1562
        %v1565 = vsub.f32 %v1553, %v1563
        %v1566 = vmul.f32 %v1564, %v1564
        %v1567 = vmul.f32 %v1565, %v1565
        %v1568 = vsel %vm769, %v1566, 0.0
        %1569 = vadd.xlane.f32.xlu0 %v1568
        %v1570 = vpop.xlane.xlu0 %1569
        %v1571 = vsel %vm769, %v1567, 0.0
        %1572 = vadd.xlane.f32.xlu0 %v1571
        %v1573 = vpop.xlane.xlu0 %1572
        %v1574 = vmul.f32 %v1570, %v1422
        %v1575 = vmul.f32 %v1573, %v1422
        %v1576 = vadd.f32 %v1574, 1e-05
        %v1577 = vadd.f32 %v1575, 1e-05
        %v1578 = vrsqrt.pop %v1576
        %v1579 = vmul.f32 %v1578, %v1576
        %v1580 = vmul.f32 %v1579, %v1578
        %v1581 = vmul.f32 0.5, %v1580
        %v1582 = vsub.f32 1.5, %v1581
        %v1583 = vmul.f32 %v1578, %v1582
        %vm1584 = vweird.f32 %v1576
        %vm1585 = vweird.f32 %v1578
        %vm1586 = vmor %vm1584, %vm1585
        %v1587 = vsel %vm1586, %v1578, %v1583
        %v1588 = vrsqrt.pop %v1577
        %v1589 = vmul.f32 %v1588, %v1577
        %v1590 = vmul.f32 %v1589, %v1588
        %v1591 = vmul.f32 0.5, %v1590
        %v1592 = vsub.f32 1.5, %v1591
        %v1593 = vmul.f32 %v1588, %v1592
        %vm1594 = vweird.f32 %v1577
        %vm1595 = vweird.f32 %v1588
        %vm1596 = vmor %vm1594, %vm1595
        %v1597 = vsel %vm1596, %v1588, %v1593
        %v1598 = vmul.f32 %v1564, %v1587
        %v1599 = vmul.f32 %v1565, %v1597
        %v1601 = vperm.slane %v1554, 0
        %v1603 = vmul.f32 %v1598, %v1601
        %v1604 = vmul.f32 %v1599, %v1601
        %v1606 = vperm.slane %v1555, 0
        %v1608 = vadd.f32 %v1603, %v1606
        %v1609 = vadd.f32 %v1604, %v1606
        %1610 = vst.msk [vmem:[#allocation2] sm:$0xff] %vm769, %v1608
        %1611 = vst.msk [vmem:[#allocation2 + $0x8] sm:$0xff] %vm769, %v1609
        %p1612 = scmp.eq.s32.totalorder %s33, 1
        // Predicated region
        $region101: #{tpu_custom_call.1} parent=75 // pred_check
          %p1613 = pneg %p1612
        $region102: #{tpu_custom_call.1} parent=75 // pred_check_branch
          %1615 = sbr.rel (%p1613) target = $region104
        $region103: #{tpu_custom_call.1} parent=75 // pred_region
          %1616 = vst.msk [vmem:[#allocation12] sm:$0xff] %vm769, %v1608
          %1617 = vst.msk [vmem:[#allocation12 + $0x8] sm:$0xff] %vm769, %v1609
        $region104: #{tpu_custom_call.1} parent=75 // pred_fallthru
          _
        // Predicated region
        $region105: #{tpu_custom_call.1} parent=75 // pred_check
          %p1618 = pneg %p422
        $region106: #{tpu_custom_call.1} parent=75 // pred_check_branch
          %1620 = sbr.rel (%p1618) target = $region108
        $region107: #{tpu_custom_call.1} parent=75 // pred_region
          %1622 = vsyncadd [#allocation6], 0
          %s1623 = smul.addr %s32, 2
          %s1624 = smul.addr %s1623, 8
          %s1625 = scalar_lea.hbm %s14, %s1624
          %s1626 = sshll.u32 [#allocation12], 4
          %s1627 = int_to_ptr.vmem [resolvable:$true] %s1626
          %s1628 = sshll.u32 %s1625, 4
          %s1629 = int_to_ptr.hbm [resolvable:$true] %s1628
          %1634 = dma.vmem_to_hbm [thread:$0]  %s1627, 256, %s1629, [#allocation6], 128, 128, 8
        $region108: #{tpu_custom_call.1} parent=75 // pred_fallthru
          _
        // Predicated region
        $region109: #{tpu_custom_call.1} parent=75 // pred_check
          %p1635 = pneg %p422
        $region110: #{tpu_custom_call.1} parent=75 // pred_check_branch
          %1637 = sbr.rel (%p1635) target = $region112
        $region111: #{tpu_custom_call.1} parent=75 // pred_region
          %1639 = dma.done [#allocation6], 256
        $region112: #{tpu_custom_call.1} parent=75 // pred_fallthru
          _
      $region76: #{tpu_custom_call.1} parent=5 // pred_fallthru
        _
      %p1640 = scmp.le.s32.totalorder 2, %s23
      // Predicated region
      $region113: #{tpu_custom_call.1} parent=5 // pred_check
        %p1641 = pneg %p1640
      $region114: #{tpu_custom_call.1} parent=5 // pred_check_branch
        %1643 = sbr.rel (%p1641) target = $region116
      $region115: #{tpu_custom_call.1} parent=5 // pred_region
        %s1644 = ssub.s32 %s23, 2
      $region116: #{tpu_custom_call.1} parent=5 // pred_fallthru
        _
    $region6: #{tpu_custom_call.1} parent=1 // loop_footer
      %s27 = sadd.s32 1, %s23
    $region7: #{tpu_custom_call.1} parent=1 // loop_footer_branch
      %22 = sbr.rel target = $region3
    $region8: #{tpu_custom_call.1} parent=1 // loop_exit
      _
    %1645 = vsyncpa [#allocation5], 1
    %s1646 = scalar_lea.sflag [#allocation5], 1
    %1647 = vsyncpa %s1646, 1
    %1648 = vsyncpa [#allocation8], 1
    %1649 = vsyncpa [#allocation6], 1
    %s1650 = scalar_lea.sflag [#allocation6], 1
    %1651 = vsyncpa %s1650, 1

</llo_original>
